<compile_context>
chip_gen: v6e
topology: v6e:2x2x1
jax: 0.10.0
libtpu: 0.0.40
codegen_flags: <defaults>
</compile_context>

<pallas_src>
import functools

import jax
import jax.numpy as jnp
from jax.experimental import pallas as pl
from jax.experimental.pallas import tpu as pltpu


LANE = 128  # TPU lane width


def _round_up(v, m):
    return ((v + m - 1) // m) * m


# ----------------------------------------------------------------------------
# Fused Pallas kernel: entire GraphConvModel forward pass
#   for l in 0..L:   x = BN_l( relu( A@x @ Wrel_l + x @ Wroot_l ) )
#   final:           y = A@x @ Wrel_f + x @ Wroot_f   (+ masked log_softmax)
# ----------------------------------------------------------------------------
def _fused_graphconv_kernel(a_ref, x_ref, w_rel_ref, w_root_ref,
                            gamma_ref, beta_ref, o_ref, *,
                            inv_n, num_bn_layers, num_classes, apply_logsoftmax):
    a = a_ref[...]          # [N, N]      bf16 mean adjacency, loaded once, reused per layer
    x = x_ref[...]          # [N, H_pad]  bf16 padded node features, resident on-chip

    def conv(x_in, l):
        # GraphConv: lin_rel(mean_agg(x)) + lin_root(x) as two K=128 MXU dots
        # (no [N, 2*H_pad] concat buffer).  bf16 inputs, f32 accumulation.
        x_bf = x_in.astype(jnp.bfloat16)
        agg = jnp.dot(a, x_bf, preferred_element_type=jnp.float32)            # [N, H] f32
        out = jnp.dot(agg.astype(jnp.bfloat16), w_rel_ref[l],
                      preferred_element_type=jnp.float32)                     # [N, H] f32
        out = out + jnp.dot(x_bf, w_root_ref[l],
                            preferred_element_type=jnp.float32)
        return out

    # proj layer + L hidden layers: conv -> ReLU -> fused BatchNorm (per-layer affine).
    # Static Python loop: L is a trace-time constant (keep unrolled while L is ~3).
    for l in range(num_bn_layers):
        y = jnp.maximum(conv(x, l), 0.0)                                      # f32
        # One-pass training-mode BatchNorm1d (biased batch stats over the node axis),
        # affine folded into a single scale/shift.  Pad lanes have gamma=beta=0, so
        # they stay exactly zero.
        s1 = jnp.sum(y, axis=0, keepdims=True)                                # [1, H]
        s2 = jnp.sum(y * y, axis=0, keepdims=True)                            # [1, H]
        mean = s1 * inv_n
        var = s2 * inv_n - mean * mean
        scale = gamma_ref[pl.ds(l, 1), :] * jax.lax.rsqrt(var + 1e-5)         # [1, H]
        shift = beta_ref[pl.ds(l, 1), :] - mean * scale                       # [1, H]
        x = y * scale + shift                                                 # f32

    # final layer (padded to 128 class lanes), optional masked log_softmax (f32).
    y = conv(x, num_bn_layers)
    if apply_logsoftmax:
        col = jax.lax.broadcasted_iota(jnp.int32, y.shape, 1)
        y = jnp.where(col < num_classes, y, jnp.float32(-1e30))  # mask pad lanes
        m = jnp.max(y, axis=1, keepdims=True)
        s = y - m
        lse = jnp.log(jnp.sum(jnp.exp(s), axis=1, keepdims=True))
        y = s - lse

    o_ref[...] = y   # lane-dense [N, 128] f32 store


def graphconv_model_fused(a_mean, x, w_rel_stack, w_root_stack,
                          gamma_stack, beta_stack, *,
                          num_classes, loss_type="nll"):
    """Run the whole GraphConvModel forward as one Pallas kernel invocation."""
    n, in_dim = x.shape
    assert n % 8 == 0, "node count must be a multiple of 8 (sublane width)"
    h_pad = w_rel_stack.shape[-1]
    num_bn_layers = gamma_stack.shape[0]

    # Pad input features to lane-dense width (pad columns are inert), cast to bf16.
    x_pad = jnp.zeros((n, h_pad), jnp.float32).at[:, :in_dim].set(x)
    x_pad = x_pad.astype(jnp.bfloat16)
    a_bf = a_mean.astype(jnp.bfloat16)

    kernel = functools.partial(
        _fused_graphconv_kernel,
        inv_n=1.0 / n,
        num_bn_layers=num_bn_layers,
        num_classes=num_classes,
        apply_logsoftmax=(loss_type != "mse"),
    )

    # Single kernel invocation, all operands fully resident in VMEM (no grid ->
    # no pointless double-buffering of a one-step pipeline).
    vmem_spec = pl.BlockSpec(memory_space=pltpu.MemorySpace.VMEM)

    operand_bytes = (a_bf.size * 2 + x_pad.size * 2 +
                     w_rel_stack.size * 2 + w_root_stack.size * 2 +
                     gamma_stack.size * 4 + beta_stack.size * 4 +
                     n * h_pad * 4)
    # Generous headroom for per-layer f32 intermediates, capped at v7x's 64 MiB.
    vmem_limit = min(int(operand_bytes * 3) + (16 << 20), 64 << 20)

    out = pl.pallas_call(
        kernel,
        out_shape=jax.ShapeDtypeStruct((n, h_pad), jnp.float32),
        in_specs=[vmem_spec] * 6,
        out_specs=vmem_spec,
        compiler_params=pltpu.CompilerParams(vmem_limit_bytes=vmem_limit),
    )(a_bf, x_pad, w_rel_stack, w_root_stack, gamma_stack, beta_stack)

    # slice off the pad class lanes
    return out[:, :num_classes]


# ----------------------------------------------------------------------------
# Parameters (real shapes) + packing into padded/stacked kernel operands
# ----------------------------------------------------------------------------
def init_params(key, input_dim, hidden_dim, num_classes, L):
    """Deterministic parameter init. Linear weights stored as [in, out]."""
    def lin(k, din, dout):
        scale = 1.0 / jnp.sqrt(jnp.float32(din))
        return scale * jax.random.normal(k, (din, dout), dtype=jnp.float32)

    keys = jax.random.split(key, 2 * (L + 2))
    params = {}
    params["proj"] = {"w_rel": lin(keys[0], input_dim, hidden_dim),
                      "w_root": lin(keys[1], input_dim, hidden_dim)}
    k = 2
    params["convs"] = []
    for _ in range(L):
        params["convs"].append({"w_rel": lin(keys[k], hidden_dim, hidden_dim),
                                "w_root": lin(keys[k + 1], hidden_dim, hidden_dim)})
        k += 2
    params["final"] = {"w_rel": lin(keys[k], hidden_dim, num_classes),
                       "w_root": lin(keys[k + 1], hidden_dim, num_classes)}
    # Independent BatchNorm1d affine params per normalized layer (proj + L hidden),
    # default init gamma=1, beta=0 (matches torch BatchNorm1d).
    params["bn_gamma"] = [jnp.ones((hidden_dim,), jnp.float32) for _ in range(L + 1)]
    params["bn_beta"] = [jnp.zeros((hidden_dim,), jnp.float32) for _ in range(L + 1)]
    return params


def pack_params(params, input_dim, hidden_dim, num_classes, L):
    """Pad to lane-dense width, stack lin_rel / lin_root separately, cast to bf16."""
    h_pad = _round_up(max(input_dim, hidden_dim, num_classes), LANE)

    def pad_w(w):
        out = jnp.zeros((h_pad, h_pad), jnp.float32)
        return out.at[:w.shape[0], :w.shape[1]].set(w)

    rel = ([params["proj"]["w_rel"]]
           + [c["w_rel"] for c in params["convs"]]
           + [params["final"]["w_rel"]])
    root = ([params["proj"]["w_root"]]
            + [c["w_root"] for c in params["convs"]]
            + [params["final"]["w_root"]])
    w_rel_stack = jnp.stack([pad_w(w) for w in rel], axis=0).astype(jnp.bfloat16)    # [L+2, H, H]
    w_root_stack = jnp.stack([pad_w(w) for w in root], axis=0).astype(jnp.bfloat16)  # [L+2, H, H]

    def pad_vec(v):
        return jnp.zeros((h_pad,), jnp.float32).at[:v.shape[0]].set(v)

    gamma_stack = jnp.stack([pad_vec(g) for g in params["bn_gamma"]], axis=0)  # [L+1, H] f32
    beta_stack = jnp.stack([pad_vec(b) for b in params["bn_beta"]], axis=0)    # [L+1, H] f32
    return w_rel_stack, w_root_stack, gamma_stack, beta_stack


def build_mean_adjacency(edge_index, num_nodes):
    """Dense row-normalized adjacency: A[i, j] = (#edges j->i) / deg_in(i)."""
    src = edge_index[0]
    dst = edge_index[1]
    adj = jnp.zeros((num_nodes, num_nodes), dtype=jnp.float32)
    adj = adj.at[dst, src].add(1.0)
    deg = jnp.sum(adj, axis=1, keepdims=True)
    return adj / jnp.maximum(deg, 1.0)  # isolated nodes -> zero aggregation (PyG 'mean')


# ----------------------------------------------------------------------------
# Main
# ----------------------------------------------------------------------------
if __name__ == "__main__":
    key = jax.random.PRNGKey(0)
    k_x, k_e, k_p = jax.random.split(key, 3)

    # small synthetic graph
    num_nodes = 64
    num_edges = 256
    input_feature_dim = 8
    hidden_feature_dim = 32
    num_classes = 4
    L = 3

    x = jax.random.normal(k_x, (num_nodes, input_feature_dim), dtype=jnp.float32)
    edge_index = jax.random.randint(k_e, (2, num_edges), 0, num_nodes,
                                    dtype=jnp.int32)

    a_mean = build_mean_adjacency(edge_index, num_nodes)
    params = init_params(k_p, input_feature_dim, hidden_feature_dim,
                         num_classes, L)
    w_rel_stack, w_root_stack, gamma_stack, beta_stack = pack_params(
        params, input_feature_dim, hidden_feature_dim, num_classes, L)

    out = graphconv_model_fused(a_mean, x, w_rel_stack, w_root_stack,
                                gamma_stack, beta_stack,
                                num_classes=num_classes, loss_type="nll")
    out = jax.block_until_ready(out)

    assert out.shape == (num_nodes, num_classes)
    assert bool(jnp.all(jnp.isfinite(out)))
    # log_softmax rows should sum (in prob space) to ~1
    assert bool(jnp.allclose(jnp.sum(jnp.exp(out), axis=1), 1.0, atol=1e-4))

    print("KERNEL_OK")
</pallas_src>

<mosaic_0001>
module attributes {stable_mosaic.version = 11 : i64} {
  func.func @_fused_graphconv_kernel(%arg0: memref<64x64xbf16, #tpu.memory_space<vmem>>, %arg1: memref<64x128xbf16, #tpu.memory_space<vmem>>, %arg2: memref<5x128x128xbf16, #tpu.memory_space<vmem>>, %arg3: memref<5x128x128xbf16, #tpu.memory_space<vmem>>, %arg4: memref<4x128xf32, #tpu.memory_space<vmem>>, %arg5: memref<4x128xf32, #tpu.memory_space<vmem>>, %arg6: memref<64x128xf32, #tpu.memory_space<vmem>>) attributes {dimension_semantics = [], scalar_prefetch = 0 : i64, scratch_operands = 0 : i64, tpu.core_type = #tpu.core_type<tc>} {
    %c0 = arith.constant 0 : index
    %c0_0 = arith.constant 0 : index
    %0 = vector.load %arg0[%c0, %c0_0] : memref<64x64xbf16, #tpu.memory_space<vmem>>, vector<64x64xbf16>
    %c0_1 = arith.constant 0 : index
    %c0_2 = arith.constant 0 : index
    %1 = vector.load %arg1[%c0_1, %c0_2] : memref<64x128xbf16, #tpu.memory_space<vmem>>, vector<64x128xbf16>
    %cst = arith.constant dense<0.000000e+00> : vector<64x128xf32>
    %2 = tpu.matmul %0, %1, %cst {dimension_numbers = #tpu.dot_dimension_numbers<[1], [0], [0], [1], [0, 0, 1, 1], [], []>} : vector<64x64xbf16>, vector<64x128xbf16>, vector<64x128xf32> -> vector<64x128xf32>
    %3 = arith.truncf %2 : vector<64x128xf32> to vector<64x128xbf16>
    %c0_3 = arith.constant 0 : index
    %c0_4 = arith.constant 0 : index
    %c0_5 = arith.constant 0 : index
    %4 = vector.load %arg2[%c0_3, %c0_4, %c0_5] : memref<5x128x128xbf16, #tpu.memory_space<vmem>>, vector<1x128x128xbf16>
    %5 = vector.shape_cast %4 : vector<1x128x128xbf16> to vector<128x128xbf16>
    %cst_6 = arith.constant dense<0.000000e+00> : vector<64x128xf32>
    %6 = tpu.matmul %3, %5, %cst_6 {dimension_numbers = #tpu.dot_dimension_numbers<[1], [0], [0], [1], [0, 0, 1, 1], [], []>} : vector<64x128xbf16>, vector<128x128xbf16>, vector<64x128xf32> -> vector<64x128xf32>
    %c0_7 = arith.constant 0 : index
    %c0_8 = arith.constant 0 : index
    %c0_9 = arith.constant 0 : index
    %7 = vector.load %arg3[%c0_7, %c0_8, %c0_9] : memref<5x128x128xbf16, #tpu.memory_space<vmem>>, vector<1x128x128xbf16>
    %8 = vector.shape_cast %7 : vector<1x128x128xbf16> to vector<128x128xbf16>
    %cst_10 = arith.constant dense<0.000000e+00> : vector<64x128xf32>
    %9 = tpu.matmul %1, %8, %cst_10 {dimension_numbers = #tpu.dot_dimension_numbers<[1], [0], [0], [1], [0, 0, 1, 1], [], []>} : vector<64x128xbf16>, vector<128x128xbf16>, vector<64x128xf32> -> vector<64x128xf32>
    %10 = arith.addf %6, %9 : vector<64x128xf32>
    %cst_11 = arith.constant 0.000000e+00 : f32
    %11 = vector.broadcast %cst_11 : f32 to vector<64x128xf32>
    %12 = arith.maximumf %10, %11 : vector<64x128xf32>
    %cst_12 = arith.constant dense<0.000000e+00> : vector<128xf32>
    %13 = vector.multi_reduction <add>, %12, %cst_12 [0] : vector<64x128xf32> to vector<128xf32>
    %14 = vector.shape_cast %13 : vector<128xf32> to vector<1x128xf32>
    %15 = arith.mulf %12, %12 : vector<64x128xf32>
    %cst_13 = arith.constant dense<0.000000e+00> : vector<128xf32>
    %16 = vector.multi_reduction <add>, %15, %cst_13 [0] : vector<64x128xf32> to vector<128xf32>
    %17 = vector.shape_cast %16 : vector<128xf32> to vector<1x128xf32>
    %cst_14 = arith.constant 1.562500e-02 : f32
    %18 = vector.broadcast %cst_14 : f32 to vector<1x128xf32>
    %19 = arith.mulf %14, %18 : vector<1x128xf32>
    %cst_15 = arith.constant 1.562500e-02 : f32
    %20 = vector.broadcast %cst_15 : f32 to vector<1x128xf32>
    %21 = arith.mulf %17, %20 : vector<1x128xf32>
    %22 = arith.mulf %19, %19 : vector<1x128xf32>
    %23 = arith.subf %21, %22 : vector<1x128xf32>
    %c0_16 = arith.constant 0 : index
    %c0_17 = arith.constant 0 : index
    %24 = vector.load %arg4[%c0_16, %c0_17] : memref<4x128xf32, #tpu.memory_space<vmem>>, vector<1x128xf32>
    %cst_18 = arith.constant 9.99999974E-6 : f32
    %25 = vector.broadcast %cst_18 : f32 to vector<1x128xf32>
    %26 = arith.addf %23, %25 : vector<1x128xf32>
    %27 = math.rsqrt %26 : vector<1x128xf32>
    %28 = arith.mulf %24, %27 : vector<1x128xf32>
    %c0_19 = arith.constant 0 : index
    %c0_20 = arith.constant 0 : index
    %29 = vector.load %arg5[%c0_19, %c0_20] : memref<4x128xf32, #tpu.memory_space<vmem>>, vector<1x128xf32>
    %30 = arith.mulf %19, %28 : vector<1x128xf32>
    %31 = arith.subf %29, %30 : vector<1x128xf32>
    %32 = vector.broadcast %28 : vector<1x128xf32> to vector<64x128xf32>
    %33 = arith.mulf %12, %32 : vector<64x128xf32>
    %34 = vector.broadcast %31 : vector<1x128xf32> to vector<64x128xf32>
    %35 = arith.addf %33, %34 : vector<64x128xf32>
    %36 = arith.truncf %35 : vector<64x128xf32> to vector<64x128xbf16>
    %cst_21 = arith.constant dense<0.000000e+00> : vector<64x128xf32>
    %37 = tpu.matmul %0, %36, %cst_21 {dimension_numbers = #tpu.dot_dimension_numbers<[1], [0], [0], [1], [0, 0, 1, 1], [], []>} : vector<64x64xbf16>, vector<64x128xbf16>, vector<64x128xf32> -> vector<64x128xf32>
    %38 = arith.truncf %37 : vector<64x128xf32> to vector<64x128xbf16>
    %c1 = arith.constant 1 : index
    %c0_22 = arith.constant 0 : index
    %c0_23 = arith.constant 0 : index
    %39 = vector.load %arg2[%c1, %c0_22, %c0_23] : memref<5x128x128xbf16, #tpu.memory_space<vmem>>, vector<1x128x128xbf16>
    %40 = vector.shape_cast %39 : vector<1x128x128xbf16> to vector<128x128xbf16>
    %cst_24 = arith.constant dense<0.000000e+00> : vector<64x128xf32>
    %41 = tpu.matmul %38, %40, %cst_24 {dimension_numbers = #tpu.dot_dimension_numbers<[1], [0], [0], [1], [0, 0, 1, 1], [], []>} : vector<64x128xbf16>, vector<128x128xbf16>, vector<64x128xf32> -> vector<64x128xf32>
    %c1_25 = arith.constant 1 : index
    %c0_26 = arith.constant 0 : index
    %c0_27 = arith.constant 0 : index
    %42 = vector.load %arg3[%c1_25, %c0_26, %c0_27] : memref<5x128x128xbf16, #tpu.memory_space<vmem>>, vector<1x128x128xbf16>
    %43 = vector.shape_cast %42 : vector<1x128x128xbf16> to vector<128x128xbf16>
    %cst_28 = arith.constant dense<0.000000e+00> : vector<64x128xf32>
    %44 = tpu.matmul %36, %43, %cst_28 {dimension_numbers = #tpu.dot_dimension_numbers<[1], [0], [0], [1], [0, 0, 1, 1], [], []>} : vector<64x128xbf16>, vector<128x128xbf16>, vector<64x128xf32> -> vector<64x128xf32>
    %45 = arith.addf %41, %44 : vector<64x128xf32>
    %cst_29 = arith.constant 0.000000e+00 : f32
    %46 = vector.broadcast %cst_29 : f32 to vector<64x128xf32>
    %47 = arith.maximumf %45, %46 : vector<64x128xf32>
    %cst_30 = arith.constant dense<0.000000e+00> : vector<128xf32>
    %48 = vector.multi_reduction <add>, %47, %cst_30 [0] : vector<64x128xf32> to vector<128xf32>
    %49 = vector.shape_cast %48 : vector<128xf32> to vector<1x128xf32>
    %50 = arith.mulf %47, %47 : vector<64x128xf32>
    %cst_31 = arith.constant dense<0.000000e+00> : vector<128xf32>
    %51 = vector.multi_reduction <add>, %50, %cst_31 [0] : vector<64x128xf32> to vector<128xf32>
    %52 = vector.shape_cast %51 : vector<128xf32> to vector<1x128xf32>
    %cst_32 = arith.constant 1.562500e-02 : f32
    %53 = vector.broadcast %cst_32 : f32 to vector<1x128xf32>
    %54 = arith.mulf %49, %53 : vector<1x128xf32>
    %cst_33 = arith.constant 1.562500e-02 : f32
    %55 = vector.broadcast %cst_33 : f32 to vector<1x128xf32>
    %56 = arith.mulf %52, %55 : vector<1x128xf32>
    %57 = arith.mulf %54, %54 : vector<1x128xf32>
    %58 = arith.subf %56, %57 : vector<1x128xf32>
    %c1_34 = arith.constant 1 : index
    %c0_35 = arith.constant 0 : index
    %59 = vector.load %arg4[%c1_34, %c0_35] : memref<4x128xf32, #tpu.memory_space<vmem>>, vector<1x128xf32>
    %cst_36 = arith.constant 9.99999974E-6 : f32
    %60 = vector.broadcast %cst_36 : f32 to vector<1x128xf32>
    %61 = arith.addf %58, %60 : vector<1x128xf32>
    %62 = math.rsqrt %61 : vector<1x128xf32>
    %63 = arith.mulf %59, %62 : vector<1x128xf32>
    %c1_37 = arith.constant 1 : index
    %c0_38 = arith.constant 0 : index
    %64 = vector.load %arg5[%c1_37, %c0_38] : memref<4x128xf32, #tpu.memory_space<vmem>>, vector<1x128xf32>
    %65 = arith.mulf %54, %63 : vector<1x128xf32>
    %66 = arith.subf %64, %65 : vector<1x128xf32>
    %67 = vector.broadcast %63 : vector<1x128xf32> to vector<64x128xf32>
    %68 = arith.mulf %47, %67 : vector<64x128xf32>
    %69 = vector.broadcast %66 : vector<1x128xf32> to vector<64x128xf32>
    %70 = arith.addf %68, %69 : vector<64x128xf32>
    %71 = arith.truncf %70 : vector<64x128xf32> to vector<64x128xbf16>
    %cst_39 = arith.constant dense<0.000000e+00> : vector<64x128xf32>
    %72 = tpu.matmul %0, %71, %cst_39 {dimension_numbers = #tpu.dot_dimension_numbers<[1], [0], [0], [1], [0, 0, 1, 1], [], []>} : vector<64x64xbf16>, vector<64x128xbf16>, vector<64x128xf32> -> vector<64x128xf32>
    %73 = arith.truncf %72 : vector<64x128xf32> to vector<64x128xbf16>
    %c2 = arith.constant 2 : index
    %c0_40 = arith.constant 0 : index
    %c0_41 = arith.constant 0 : index
    %74 = vector.load %arg2[%c2, %c0_40, %c0_41] : memref<5x128x128xbf16, #tpu.memory_space<vmem>>, vector<1x128x128xbf16>
    %75 = vector.shape_cast %74 : vector<1x128x128xbf16> to vector<128x128xbf16>
    %cst_42 = arith.constant dense<0.000000e+00> : vector<64x128xf32>
    %76 = tpu.matmul %73, %75, %cst_42 {dimension_numbers = #tpu.dot_dimension_numbers<[1], [0], [0], [1], [0, 0, 1, 1], [], []>} : vector<64x128xbf16>, vector<128x128xbf16>, vector<64x128xf32> -> vector<64x128xf32>
    %c2_43 = arith.constant 2 : index
    %c0_44 = arith.constant 0 : index
    %c0_45 = arith.constant 0 : index
    %77 = vector.load %arg3[%c2_43, %c0_44, %c0_45] : memref<5x128x128xbf16, #tpu.memory_space<vmem>>, vector<1x128x128xbf16>
    %78 = vector.shape_cast %77 : vector<1x128x128xbf16> to vector<128x128xbf16>
    %cst_46 = arith.constant dense<0.000000e+00> : vector<64x128xf32>
    %79 = tpu.matmul %71, %78, %cst_46 {dimension_numbers = #tpu.dot_dimension_numbers<[1], [0], [0], [1], [0, 0, 1, 1], [], []>} : vector<64x128xbf16>, vector<128x128xbf16>, vector<64x128xf32> -> vector<64x128xf32>
    %80 = arith.addf %76, %79 : vector<64x128xf32>
    %cst_47 = arith.constant 0.000000e+00 : f32
    %81 = vector.broadcast %cst_47 : f32 to vector<64x128xf32>
    %82 = arith.maximumf %80, %81 : vector<64x128xf32>
    %cst_48 = arith.constant dense<0.000000e+00> : vector<128xf32>
    %83 = vector.multi_reduction <add>, %82, %cst_48 [0] : vector<64x128xf32> to vector<128xf32>
    %84 = vector.shape_cast %83 : vector<128xf32> to vector<1x128xf32>
    %85 = arith.mulf %82, %82 : vector<64x128xf32>
    %cst_49 = arith.constant dense<0.000000e+00> : vector<128xf32>
    %86 = vector.multi_reduction <add>, %85, %cst_49 [0] : vector<64x128xf32> to vector<128xf32>
    %87 = vector.shape_cast %86 : vector<128xf32> to vector<1x128xf32>
    %cst_50 = arith.constant 1.562500e-02 : f32
    %88 = vector.broadcast %cst_50 : f32 to vector<1x128xf32>
    %89 = arith.mulf %84, %88 : vector<1x128xf32>
    %cst_51 = arith.constant 1.562500e-02 : f32
    %90 = vector.broadcast %cst_51 : f32 to vector<1x128xf32>
    %91 = arith.mulf %87, %90 : vector<1x128xf32>
    %92 = arith.mulf %89, %89 : vector<1x128xf32>
    %93 = arith.subf %91, %92 : vector<1x128xf32>
    %c2_52 = arith.constant 2 : index
    %c0_53 = arith.constant 0 : index
    %94 = vector.load %arg4[%c2_52, %c0_53] : memref<4x128xf32, #tpu.memory_space<vmem>>, vector<1x128xf32>
    %cst_54 = arith.constant 9.99999974E-6 : f32
    %95 = vector.broadcast %cst_54 : f32 to vector<1x128xf32>
    %96 = arith.addf %93, %95 : vector<1x128xf32>
    %97 = math.rsqrt %96 : vector<1x128xf32>
    %98 = arith.mulf %94, %97 : vector<1x128xf32>
    %c2_55 = arith.constant 2 : index
    %c0_56 = arith.constant 0 : index
    %99 = vector.load %arg5[%c2_55, %c0_56] : memref<4x128xf32, #tpu.memory_space<vmem>>, vector<1x128xf32>
    %100 = arith.mulf %89, %98 : vector<1x128xf32>
    %101 = arith.subf %99, %100 : vector<1x128xf32>
    %102 = vector.broadcast %98 : vector<1x128xf32> to vector<64x128xf32>
    %103 = arith.mulf %82, %102 : vector<64x128xf32>
    %104 = vector.broadcast %101 : vector<1x128xf32> to vector<64x128xf32>
    %105 = arith.addf %103, %104 : vector<64x128xf32>
    %106 = arith.truncf %105 : vector<64x128xf32> to vector<64x128xbf16>
    %cst_57 = arith.constant dense<0.000000e+00> : vector<64x128xf32>
    %107 = tpu.matmul %0, %106, %cst_57 {dimension_numbers = #tpu.dot_dimension_numbers<[1], [0], [0], [1], [0, 0, 1, 1], [], []>} : vector<64x64xbf16>, vector<64x128xbf16>, vector<64x128xf32> -> vector<64x128xf32>
    %108 = arith.truncf %107 : vector<64x128xf32> to vector<64x128xbf16>
    %c3 = arith.constant 3 : index
    %c0_58 = arith.constant 0 : index
    %c0_59 = arith.constant 0 : index
    %109 = vector.load %arg2[%c3, %c0_58, %c0_59] : memref<5x128x128xbf16, #tpu.memory_space<vmem>>, vector<1x128x128xbf16>
    %110 = vector.shape_cast %109 : vector<1x128x128xbf16> to vector<128x128xbf16>
    %cst_60 = arith.constant dense<0.000000e+00> : vector<64x128xf32>
    %111 = tpu.matmul %108, %110, %cst_60 {dimension_numbers = #tpu.dot_dimension_numbers<[1], [0], [0], [1], [0, 0, 1, 1], [], []>} : vector<64x128xbf16>, vector<128x128xbf16>, vector<64x128xf32> -> vector<64x128xf32>
    %c3_61 = arith.constant 3 : index
    %c0_62 = arith.constant 0 : index
    %c0_63 = arith.constant 0 : index
    %112 = vector.load %arg3[%c3_61, %c0_62, %c0_63] : memref<5x128x128xbf16, #tpu.memory_space<vmem>>, vector<1x128x128xbf16>
    %113 = vector.shape_cast %112 : vector<1x128x128xbf16> to vector<128x128xbf16>
    %cst_64 = arith.constant dense<0.000000e+00> : vector<64x128xf32>
    %114 = tpu.matmul %106, %113, %cst_64 {dimension_numbers = #tpu.dot_dimension_numbers<[1], [0], [0], [1], [0, 0, 1, 1], [], []>} : vector<64x128xbf16>, vector<128x128xbf16>, vector<64x128xf32> -> vector<64x128xf32>
    %115 = arith.addf %111, %114 : vector<64x128xf32>
    %cst_65 = arith.constant 0.000000e+00 : f32
    %116 = vector.broadcast %cst_65 : f32 to vector<64x128xf32>
    %117 = arith.maximumf %115, %116 : vector<64x128xf32>
    %cst_66 = arith.constant dense<0.000000e+00> : vector<128xf32>
    %118 = vector.multi_reduction <add>, %117, %cst_66 [0] : vector<64x128xf32> to vector<128xf32>
    %119 = vector.shape_cast %118 : vector<128xf32> to vector<1x128xf32>
    %120 = arith.mulf %117, %117 : vector<64x128xf32>
    %cst_67 = arith.constant dense<0.000000e+00> : vector<128xf32>
    %121 = vector.multi_reduction <add>, %120, %cst_67 [0] : vector<64x128xf32> to vector<128xf32>
    %122 = vector.shape_cast %121 : vector<128xf32> to vector<1x128xf32>
    %cst_68 = arith.constant 1.562500e-02 : f32
    %123 = vector.broadcast %cst_68 : f32 to vector<1x128xf32>
    %124 = arith.mulf %119, %123 : vector<1x128xf32>
    %cst_69 = arith.constant 1.562500e-02 : f32
    %125 = vector.broadcast %cst_69 : f32 to vector<1x128xf32>
    %126 = arith.mulf %122, %125 : vector<1x128xf32>
    %127 = arith.mulf %124, %124 : vector<1x128xf32>
    %128 = arith.subf %126, %127 : vector<1x128xf32>
    %c3_70 = arith.constant 3 : index
    %c0_71 = arith.constant 0 : index
    %129 = vector.load %arg4[%c3_70, %c0_71] : memref<4x128xf32, #tpu.memory_space<vmem>>, vector<1x128xf32>
    %cst_72 = arith.constant 9.99999974E-6 : f32
    %130 = vector.broadcast %cst_72 : f32 to vector<1x128xf32>
    %131 = arith.addf %128, %130 : vector<1x128xf32>
    %132 = math.rsqrt %131 : vector<1x128xf32>
    %133 = arith.mulf %129, %132 : vector<1x128xf32>
    %c3_73 = arith.constant 3 : index
    %c0_74 = arith.constant 0 : index
    %134 = vector.load %arg5[%c3_73, %c0_74] : memref<4x128xf32, #tpu.memory_space<vmem>>, vector<1x128xf32>
    %135 = arith.mulf %124, %133 : vector<1x128xf32>
    %136 = arith.subf %134, %135 : vector<1x128xf32>
    %137 = vector.broadcast %133 : vector<1x128xf32> to vector<64x128xf32>
    %138 = arith.mulf %117, %137 : vector<64x128xf32>
    %139 = vector.broadcast %136 : vector<1x128xf32> to vector<64x128xf32>
    %140 = arith.addf %138, %139 : vector<64x128xf32>
    %141 = arith.truncf %140 : vector<64x128xf32> to vector<64x128xbf16>
    %cst_75 = arith.constant dense<0.000000e+00> : vector<64x128xf32>
    %142 = tpu.matmul %0, %141, %cst_75 {dimension_numbers = #tpu.dot_dimension_numbers<[1], [0], [0], [1], [0, 0, 1, 1], [], []>} : vector<64x64xbf16>, vector<64x128xbf16>, vector<64x128xf32> -> vector<64x128xf32>
    %143 = arith.truncf %142 : vector<64x128xf32> to vector<64x128xbf16>
    %c4 = arith.constant 4 : index
    %c0_76 = arith.constant 0 : index
    %c0_77 = arith.constant 0 : index
    %144 = vector.load %arg2[%c4, %c0_76, %c0_77] : memref<5x128x128xbf16, #tpu.memory_space<vmem>>, vector<1x128x128xbf16>
    %145 = vector.shape_cast %144 : vector<1x128x128xbf16> to vector<128x128xbf16>
    %cst_78 = arith.constant dense<0.000000e+00> : vector<64x128xf32>
    %146 = tpu.matmul %143, %145, %cst_78 {dimension_numbers = #tpu.dot_dimension_numbers<[1], [0], [0], [1], [0, 0, 1, 1], [], []>} : vector<64x128xbf16>, vector<128x128xbf16>, vector<64x128xf32> -> vector<64x128xf32>
    %c4_79 = arith.constant 4 : index
    %c0_80 = arith.constant 0 : index
    %c0_81 = arith.constant 0 : index
    %147 = vector.load %arg3[%c4_79, %c0_80, %c0_81] : memref<5x128x128xbf16, #tpu.memory_space<vmem>>, vector<1x128x128xbf16>
    %148 = vector.shape_cast %147 : vector<1x128x128xbf16> to vector<128x128xbf16>
    %cst_82 = arith.constant dense<0.000000e+00> : vector<64x128xf32>
    %149 = tpu.matmul %141, %148, %cst_82 {dimension_numbers = #tpu.dot_dimension_numbers<[1], [0], [0], [1], [0, 0, 1, 1], [], []>} : vector<64x128xbf16>, vector<128x128xbf16>, vector<64x128xf32> -> vector<64x128xf32>
    %150 = arith.addf %146, %149 : vector<64x128xf32>
    %151 = tpu.iota {dimensions = array<i32: 1>} : vector<64x128xi32>
    %c4_i32 = arith.constant 4 : i32
    %152 = vector.broadcast %c4_i32 : i32 to vector<64x128xi32>
    %153 = arith.cmpi slt, %151, %152 : vector<64x128xi32>
    %cst_83 = arith.constant -1.000000e+30 : f32
    %154 = vector.broadcast %cst_83 : f32 to vector<64x128xf32>
    %155 = arith.select %153, %150, %154 : vector<64x128xi1>, vector<64x128xf32>
    %cst_84 = arith.constant dense<0xFF800000> : vector<64xf32>
    %156 = vector.multi_reduction <maximumf>, %155, %cst_84 [1] : vector<64x128xf32> to vector<64xf32>
    %157 = vector.shape_cast %156 : vector<64xf32> to vector<64x1xf32>
    %158 = vector.broadcast %157 : vector<64x1xf32> to vector<64x128xf32>
    %159 = arith.subf %155, %158 : vector<64x128xf32>
    %160 = math.exp %159 : vector<64x128xf32>
    %cst_85 = arith.constant dense<0.000000e+00> : vector<64xf32>
    %161 = vector.multi_reduction <add>, %160, %cst_85 [1] : vector<64x128xf32> to vector<64xf32>
    %162 = vector.shape_cast %161 : vector<64xf32> to vector<64x1xf32>
    %163 = math.log %162 : vector<64x1xf32>
    %164 = vector.broadcast %163 : vector<64x1xf32> to vector<64x128xf32>
    %165 = arith.subf %159, %164 : vector<64x128xf32>
    %c0_86 = arith.constant 0 : index
    %c0_87 = arith.constant 0 : index
    %166 = vector.load %arg6[%c0_86, %c0_87] : memref<64x128xf32, #tpu.memory_space<vmem>>, vector<64x128xf32>
    tpu.vector_store %arg6[%c0_86, %c0_87], %165 {strides = array<i32>} : memref<64x128xf32, #tpu.memory_space<vmem>>, vector<64x128xf32>,
    return
  }
}

</mosaic_0001>

<llo_original>
// kernel: tpu_custom_call.1
$region0: #{tpu_custom_call.1}
  #allocation0 [shape = 'u32[]', space=smem, size = 0x4, offset = 0x4, fixed_abs, tag = 'smem constant byte address 0x4 - core index']
  #allocation1 [shape = 'u32[144,128]{1,0:T(1,128)}', space=vmem, size = 0x12000, scoped, tag = 'internal scratch']
  %s0 = inlined_call_operand.hbm [shape: bf16[64,64], index: 0, kind: input, shape index: {}]
  %s1 = inlined_call_operand.hbm [shape: bf16[64,128], index: 1, kind: input, shape index: {}]
  %s2 = inlined_call_operand.hbm [shape: bf16[5,128,128], index: 2, kind: input, shape index: {}]
  %s3 = inlined_call_operand.hbm [shape: bf16[5,128,128], index: 3, kind: input, shape index: {}]
  %s4 = inlined_call_operand.vmem [shape: f32[4,128], index: 4, kind: input, shape index: {}]
  %s5 = inlined_call_operand.vmem [shape: f32[4,128], index: 5, kind: input, shape index: {}]
  %s6 = inlined_call_operand.hbm [shape: f32[64,128], index: 6, kind: output, shape index: {}]
  %s7 = sld [smem:[#allocation0]]
  $region50: #{tpu_custom_call.1} parent=0
    _
  %s9 = ssub.s32 1, %s7
  %s10 = scalar_select 0, %s9, %s7
  $region1: #{tpu_custom_call.1} parent=0
    #allocation2 [shape = 'u8[16384]{0}', space=vmem, size = 0x4000, scoped, tag = 'input window, operand 0, single buffered']
    #allocation3 [shape = 's32[1]{0}', space=sflag, size = 0x4, scoped, tag = 'scoped memory for tpu_custom_call.1']
    #allocation4 [shape = 's32[1]{0}', space=sflag, size = 0x4, scoped, tag = 'scoped memory for tpu_custom_call.1']
    #allocation5 [shape = 'u8[16384]{0}', space=vmem, size = 0x4000, scoped, tag = 'input window, operand 1, single buffered']
    #allocation6 [shape = 's32[1]{0}', space=sflag, size = 0x4, scoped, tag = 'scoped memory for tpu_custom_call.1']
    #allocation7 [shape = 'u8[163840]{0}', space=vmem, size = 0x28000, scoped, tag = 'input window, operand 2, single buffered']
    #allocation8 [shape = 'u8[163840]{0}', space=vmem, size = 0x28000, scoped, tag = 'input window, operand 3, single buffered']
    #allocation9 [shape = 's32[1]{0}', space=sflag, size = 0x4, scoped, tag = 'scoped memory for tpu_custom_call.1']
    #allocation10 [shape = 'u8[32768]{0}', space=vmem, size = 0x8000, scoped, tag = 'output window, operand 0, single buffered']
    %11 = vsyncpa [#allocation3], 0
    %12 = vsyncpa [#allocation6], 0
    %13 = vsyncpa [#allocation9], 0
    %14 = vsyncpa [#allocation4], 0
    // Predicated region
    $region2: #{tpu_custom_call.1} parent=1 // pred_check
      _
    $region3: #{tpu_custom_call.1} parent=1 // pred_check_branch
      %16 = sbr.rel (0) target = $region5
    $region4: #{tpu_custom_call.1} parent=1 // pred_region
      %s18 = ssub.s32 512, 512
      %19 = vsyncadd [#allocation3], %s18
      %s20 = sshll.u32 [#allocation2], 4
      %s21 = int_to_ptr.vmem [resolvable:$true] %s20
      %26 = dma.hbm_to_vmem [thread:$0]  %s0, 512, %s21, [#allocation3], 64, 64, 4
    $region5: #{tpu_custom_call.1} parent=1 // pred_fallthru
      _
    // Predicated region
    $region6: #{tpu_custom_call.1} parent=1 // pred_check
      _
    $region7: #{tpu_custom_call.1} parent=1 // pred_check_branch
      %28 = sbr.rel (0) target = $region9
    $region8: #{tpu_custom_call.1} parent=1 // pred_region
      %s30 = ssub.s32 512, 512
      %31 = vsyncadd [#allocation6], %s30
      %s32 = sshll.u32 [#allocation5], 4
      %s33 = int_to_ptr.vmem [resolvable:$true] %s32
      %38 = dma.hbm_to_vmem [thread:$0]  %s1, 512, %s33, [#allocation6], 64, 64, 4
    $region9: #{tpu_custom_call.1} parent=1 // pred_fallthru
      _
    // Predicated region
    $region10: #{tpu_custom_call.1} parent=1 // pred_check
      _
    $region11: #{tpu_custom_call.1} parent=1 // pred_check_branch
      %40 = sbr.rel (0) target = $region13
    $region12: #{tpu_custom_call.1} parent=1 // pred_region
      %s42 = ssub.s32 5120, 5120
      %43 = vsyncadd [#allocation6], %s42
      %s44 = sshll.u32 [#allocation7], 4
      %s45 = int_to_ptr.vmem [resolvable:$true] %s44
      %50 = dma.hbm_to_vmem [thread:$0]  %s2, 5120, %s45, [#allocation6], 64, 64, 4
    $region13: #{tpu_custom_call.1} parent=1 // pred_fallthru
      _
    // Predicated region
    $region14: #{tpu_custom_call.1} parent=1 // pred_check
      _
    $region15: #{tpu_custom_call.1} parent=1 // pred_check_branch
      %52 = sbr.rel (0) target = $region17
    $region16: #{tpu_custom_call.1} parent=1 // pred_region
      %s54 = ssub.s32 5120, 5120
      %55 = vsyncadd [#allocation9], %s54
      %s56 = sshll.u32 [#allocation8], 4
      %s57 = int_to_ptr.vmem [resolvable:$true] %s56
      %62 = dma.hbm_to_vmem [thread:$0]  %s3, 5120, %s57, [#allocation9], 64, 64, 4
    $region17: #{tpu_custom_call.1} parent=1 // pred_fallthru
      _
    // Predicated region
    $region18: #{tpu_custom_call.1} parent=1 // pred_check
      _
    $region19: #{tpu_custom_call.1} parent=1 // pred_check_branch
      %64 = sbr.rel (0) target = $region21
    $region20: #{tpu_custom_call.1} parent=1 // pred_region
      _
    $region21: #{tpu_custom_call.1} parent=1 // pred_fallthru
      _
    // Predicated region
    $region22: #{tpu_custom_call.1} parent=1 // pred_check
      _
    $region23: #{tpu_custom_call.1} parent=1 // pred_check_branch
      %66 = sbr.rel (0) target = $region25
    $region24: #{tpu_custom_call.1} parent=1 // pred_region
      _
    $region25: #{tpu_custom_call.1} parent=1 // pred_fallthru
      _
    // Predicated region
    $region26: #{tpu_custom_call.1} parent=1 // pred_check
      _
    $region27: #{tpu_custom_call.1} parent=1 // pred_check_branch
      %68 = sbr.rel (0) target = $region29
    $region28: #{tpu_custom_call.1} parent=1 // pred_region
      %69 = dma.done [#allocation3], 512
    $region29: #{tpu_custom_call.1} parent=1 // pred_fallthru
      _
    // Predicated region
    $region30: #{tpu_custom_call.1} parent=1 // pred_check
      _
    $region31: #{tpu_custom_call.1} parent=1 // pred_check_branch
      %71 = sbr.rel (0) target = $region33
    $region32: #{tpu_custom_call.1} parent=1 // pred_region
      %72 = dma.done [#allocation6], 512
    $region33: #{tpu_custom_call.1} parent=1 // pred_fallthru
      _
    // Predicated region
    $region34: #{tpu_custom_call.1} parent=1 // pred_check
      _
    $region35: #{tpu_custom_call.1} parent=1 // pred_check_branch
      %74 = sbr.rel (0) target = $region37
    $region36: #{tpu_custom_call.1} parent=1 // pred_region
      %75 = dma.done [#allocation6], 5120
    $region37: #{tpu_custom_call.1} parent=1 // pred_fallthru
      _
    // Predicated region
    $region38: #{tpu_custom_call.1} parent=1 // pred_check
      _
    $region39: #{tpu_custom_call.1} parent=1 // pred_check_branch
      %77 = sbr.rel (0) target = $region41
    $region40: #{tpu_custom_call.1} parent=1 // pred_region
      %78 = dma.done [#allocation9], 5120
    $region41: #{tpu_custom_call.1} parent=1 // pred_fallthru
      _
    %v80 = vld [vmem:[#allocation2] sm:$0xf]
    %v81 = vld [vmem:[#allocation2 + $0x4] sm:$0xf]
    %v82 = vld [vmem:[#allocation2 + $0x8] sm:$0xf]
    %v83 = vld [vmem:[#allocation2 + $0xc] sm:$0xf]
    %v84 = vld [vmem:[#allocation2 + $0x10] sm:$0xf]
    %v85 = vld [vmem:[#allocation2 + $0x14] sm:$0xf]
    %v86 = vld [vmem:[#allocation2 + $0x18] sm:$0xf]
    %v87 = vld [vmem:[#allocation2 + $0x1c] sm:$0xf]
    %v88 = vld [vmem:[#allocation5] sm:$0xf]
    %v89 = vld [vmem:[#allocation5 + $0x4] sm:$0xf]
    %v90 = vld [vmem:[#allocation5 + $0x8] sm:$0xf]
    %v91 = vld [vmem:[#allocation5 + $0xc] sm:$0xf]
    %v92 = vld [vmem:[#allocation5 + $0x10] sm:$0xf]
    %v93 = vld [vmem:[#allocation5 + $0x14] sm:$0xf]
    %v94 = vld [vmem:[#allocation5 + $0x18] sm:$0xf]
    %v95 = vld [vmem:[#allocation5 + $0x1c] sm:$0xf]
    %v104 = vunpack.c.l.b16 %v80
    %v105 = vunpack.c.l.b16 %v81
    %v106 = vunpack.c.l.b16 %v82
    %v107 = vunpack.c.l.b16 %v83
    %v108 = vunpack.c.l.b16 %v84
    %v109 = vunpack.c.l.b16 %v85
    %v110 = vunpack.c.l.b16 %v86
    %v111 = vunpack.c.l.b16 %v87
    %v112 = vpack.c.b16 %v105, %v104
    %v113 = vpack.c.b16 %v107, %v106
    %v114 = vpack.c.b16 %v109, %v108
    %v115 = vpack.c.b16 %v111, %v110
    %v124 = vunpack.c.l.b16 %v88
    %v125 = vunpack.c.l.b16 %v89
    %v126 = vunpack.c.l.b16 %v90
    %v127 = vunpack.c.l.b16 %v91
    %v128 = vunpack.c.l.b16 %v92
    %v129 = vunpack.c.l.b16 %v93
    %v130 = vunpack.c.l.b16 %v94
    %v131 = vunpack.c.l.b16 %v95
    %v132 = vpack.c.b16 %v125, %v124
    %v133 = vpack.c.b16 %v127, %v126
    %v134 = vpack.c.b16 %v129, %v128
    %v135 = vpack.c.b16 %v131, %v130
    %vm140 = vcmask 523264
    %v142 = vsel %vm140, %v112, 0
    %v145 = vsel %vm140, %v113, 0
    %v148 = vsel %vm140, %v114, 0
    %v151 = vsel %vm140, %v115, 0
    %153 = vmatprep.subr.bf16.mxu0 0
    %154 = vmatpush1.bf16.msra.mxu0 0
    %155 = vmatprep.subr.bf16.mxu0 0
    %156 = vmatpush1.bf16.msra.mxu0 0
    %157 = vmatprep.subr.bf16.mxu0 0
    %158 = vmatpush1.bf16.msra.mxu0 0
    %159 = vmatprep.subr.bf16.mxu0 0
    %160 = vmatpush1.bf16.msra.mxu0 0
    %161 = vmatprep.subr.bf16.mxu0 0
    %162 = vmatpush1.bf16.msra.mxu0 %v135
    %163 = vmatprep.subr.bf16.mxu0 0
    %164 = vmatpush1.bf16.msra.mxu0 %v134
    %165 = vmatprep.subr.bf16.mxu0 0
    %166 = vmatpush1.bf16.msra.mxu0 %v133
    %167 = vmatprep.subr.bf16.mxu0 0
    %168 = vmatpush1.bf16.msra.mxu0 %v132
    %169 = vmatprep.subr.bf16.mxu0 0
    %170 = vmatpush2.bf16.msra.mxu0 0
    %171 = vmatprep.subr.bf16.mxu0 0
    %172 = vmatpush2.bf16.msra.mxu0 0
    %173 = vmatprep.subr.bf16.mxu0 0
    %174 = vmatpush2.bf16.msra.mxu0 0
    %175 = vmatprep.subr.bf16.mxu0 0
    %176 = vmatpush2.bf16.msra.mxu0 0
    %177 = vmatprep.subr.bf16.mxu0 0
    %178 = vmatpush2.bf16.msra.mxu0 0
    %179 = vmatprep.subr.bf16.mxu0 0
    %180 = vmatpush2.bf16.msra.mxu0 0
    %181 = vmatprep.subr.bf16.mxu0 0
    %182 = vmatpush2.bf16.msra.mxu0 0
    %183 = vmatprep.subr.bf16.mxu0 0
    %184 = vmatpush2.bf16.msra.mxu0 0
    %185 = vmatprep.mubr.bf16.mxu0 0
    %186 = vmatmul.mubr.bf16.gmra.mxu0 %v142
    %v187 = vpop.f32.mrf.mxu0
    %v188 = vadd.f32 0.0, %v187
    %v189 = vpop.f32.mrf.mxu0
    %v190 = vpop.f32.mrf.mxu0
    %v191 = vadd.f32 0.0, %v190
    %v192 = vpop.f32.mrf.mxu0
    %193 = vmatprep.mubr.bf16.mxu0 0
    %194 = vmatmul.mubr.bf16.gmra.mxu0 %v145
    %v195 = vpop.f32.mrf.mxu0
    %v196 = vadd.f32 0.0, %v195
    %v197 = vpop.f32.mrf.mxu0
    %v198 = vpop.f32.mrf.mxu0
    %v199 = vadd.f32 0.0, %v198
    %v200 = vpop.f32.mrf.mxu0
    %201 = vmatprep.mubr.bf16.mxu0 0
    %202 = vmatmul.mubr.bf16.gmra.mxu0 %v148
    %v203 = vpop.f32.mrf.mxu0
    %v204 = vadd.f32 0.0, %v203
    %v205 = vpop.f32.mrf.mxu0
    %v206 = vpop.f32.mrf.mxu0
    %v207 = vadd.f32 0.0, %v206
    %v208 = vpop.f32.mrf.mxu0
    %209 = vmatprep.mubr.bf16.mxu0 0
    %210 = vmatmul.mubr.bf16.gmra.mxu0 %v151
    %v211 = vpop.f32.mrf.mxu0
    %v212 = vadd.f32 0.0, %v211
    %v213 = vpop.f32.mrf.mxu0
    %v214 = vpop.f32.mrf.mxu0
    %v215 = vadd.f32 0.0, %v214
    %v216 = vpop.f32.mrf.mxu0
    %217 = vdwg.mxu0
    %v218 = vpack.c.bf16 %v191, %v188
    %v219 = vpack.c.bf16 %v199, %v196
    %v220 = vpack.c.bf16 %v207, %v204
    %v221 = vpack.c.bf16 %v215, %v212
    %v222 = vld [vmem:[#allocation7] sm:$0xf]
    %v223 = vld [vmem:[#allocation7 + $0x4] sm:$0xf]
    %v224 = vld [vmem:[#allocation7 + $0x8] sm:$0xf]
    %v225 = vld [vmem:[#allocation7 + $0xc] sm:$0xf]
    %v226 = vld [vmem:[#allocation7 + $0x10] sm:$0xf]
    %v227 = vld [vmem:[#allocation7 + $0x14] sm:$0xf]
    %v228 = vld [vmem:[#allocation7 + $0x18] sm:$0xf]
    %v229 = vld [vmem:[#allocation7 + $0x1c] sm:$0xf]
    %v230 = vld [vmem:[#allocation7 + $0x20] sm:$0xf]
    %v231 = vld [vmem:[#allocation7 + $0x24] sm:$0xf]
    %v232 = vld [vmem:[#allocation7 + $0x28] sm:$0xf]
    %v233 = vld [vmem:[#allocation7 + $0x2c] sm:$0xf]
    %v234 = vld [vmem:[#allocation7 + $0x30] sm:$0xf]
    %v235 = vld [vmem:[#allocation7 + $0x34] sm:$0xf]
    %v236 = vld [vmem:[#allocation7 + $0x38] sm:$0xf]
    %v237 = vld [vmem:[#allocation7 + $0x3c] sm:$0xf]
    %v238 = vld [vmem:[#allocation8] sm:$0xf]
    %v239 = vld [vmem:[#allocation8 + $0x4] sm:$0xf]
    %v240 = vld [vmem:[#allocation8 + $0x8] sm:$0xf]
    %v241 = vld [vmem:[#allocation8 + $0xc] sm:$0xf]
    %v242 = vld [vmem:[#allocation8 + $0x10] sm:$0xf]
    %v243 = vld [vmem:[#allocation8 + $0x14] sm:$0xf]
    %v244 = vld [vmem:[#allocation8 + $0x18] sm:$0xf]
    %v245 = vld [vmem:[#allocation8 + $0x1c] sm:$0xf]
    %v246 = vld [vmem:[#allocation8 + $0x20] sm:$0xf]
    %v247 = vld [vmem:[#allocation8 + $0x24] sm:$0xf]
    %v248 = vld [vmem:[#allocation8 + $0x28] sm:$0xf]
    %v249 = vld [vmem:[#allocation8 + $0x2c] sm:$0xf]
    %v250 = vld [vmem:[#allocation8 + $0x30] sm:$0xf]
    %v251 = vld [vmem:[#allocation8 + $0x34] sm:$0xf]
    %v252 = vld [vmem:[#allocation8 + $0x38] sm:$0xf]
    %v253 = vld [vmem:[#allocation8 + $0x3c] sm:$0xf]
    %v270 = vunpack.c.l.b16 %v238
    %v271 = vunpack.c.l.b16 %v239
    %v272 = vunpack.c.l.b16 %v240
    %v273 = vunpack.c.l.b16 %v241
    %v274 = vunpack.c.l.b16 %v242
    %v275 = vunpack.c.l.b16 %v243
    %v276 = vunpack.c.l.b16 %v244
    %v277 = vunpack.c.l.b16 %v245
    %v278 = vunpack.c.l.b16 %v246
    %v279 = vunpack.c.l.b16 %v247
    %v280 = vunpack.c.l.b16 %v248
    %v281 = vunpack.c.l.b16 %v249
    %v282 = vunpack.c.l.b16 %v250
    %v283 = vunpack.c.l.b16 %v251
    %v284 = vunpack.c.l.b16 %v252
    %v285 = vunpack.c.l.b16 %v253
    %v286 = vpack.c.b16 %v271, %v270
    %v287 = vpack.c.b16 %v273, %v272
    %v288 = vpack.c.b16 %v275, %v274
    %v289 = vpack.c.b16 %v277, %v276
    %v290 = vpack.c.b16 %v279, %v278
    %v291 = vpack.c.b16 %v281, %v280
    %v292 = vpack.c.b16 %v283, %v282
    %v293 = vpack.c.b16 %v285, %v284
    %302 = vmatprep.subr.bf16.mxu0 0
    %303 = vmatpush1.bf16.msra.mxu0 %v293
    %304 = vmatprep.subr.bf16.mxu0 0
    %305 = vmatpush1.bf16.msra.mxu0 %v292
    %306 = vmatprep.subr.bf16.mxu0 0
    %307 = vmatpush1.bf16.msra.mxu0 %v291
    %308 = vmatprep.subr.bf16.mxu0 0
    %309 = vmatpush1.bf16.msra.mxu0 %v290
    %310 = vmatprep.subr.bf16.mxu0 0
    %311 = vmatpush1.bf16.msra.mxu0 %v289
    %312 = vmatprep.subr.bf16.mxu0 0
    %313 = vmatpush1.bf16.msra.mxu0 %v288
    %314 = vmatprep.subr.bf16.mxu0 0
    %315 = vmatpush1.bf16.msra.mxu0 %v287
    %316 = vmatprep.subr.bf16.mxu0 0
    %317 = vmatpush1.bf16.msra.mxu0 %v286
    %318 = vmatprep.subr.bf16.mxu0 0
    %319 = vmatpush2.bf16.msra.mxu0 0
    %320 = vmatprep.subr.bf16.mxu0 0
    %321 = vmatpush2.bf16.msra.mxu0 0
    %322 = vmatprep.subr.bf16.mxu0 0
    %323 = vmatpush2.bf16.msra.mxu0 0
    %324 = vmatprep.subr.bf16.mxu0 0
    %325 = vmatpush2.bf16.msra.mxu0 0
    %326 = vmatprep.subr.bf16.mxu0 0
    %327 = vmatpush2.bf16.msra.mxu0 0
    %328 = vmatprep.subr.bf16.mxu0 0
    %329 = vmatpush2.bf16.msra.mxu0 0
    %330 = vmatprep.subr.bf16.mxu0 0
    %331 = vmatpush2.bf16.msra.mxu0 0
    %332 = vmatprep.subr.bf16.mxu0 0
    %333 = vmatpush2.bf16.msra.mxu0 0
    %334 = vmatprep.mubr.bf16.mxu0 0
    %335 = vmatmul.mubr.bf16.gmra.mxu0 %v132
    %v336 = vpop.f32.mrf.mxu0
    %v337 = vadd.f32 0.0, %v336
    %v338 = vpop.f32.mrf.mxu0
    %v339 = vpop.f32.mrf.mxu0
    %v340 = vadd.f32 0.0, %v339
    %v341 = vpop.f32.mrf.mxu0
    %342 = vmatprep.mubr.bf16.mxu0 0
    %343 = vmatmul.mubr.bf16.gmra.mxu0 %v133
    %v344 = vpop.f32.mrf.mxu0
    %v345 = vadd.f32 0.0, %v344
    %v346 = vpop.f32.mrf.mxu0
    %v347 = vpop.f32.mrf.mxu0
    %v348 = vadd.f32 0.0, %v347
    %v349 = vpop.f32.mrf.mxu0
    %350 = vmatprep.mubr.bf16.mxu0 0
    %351 = vmatmul.mubr.bf16.gmra.mxu0 %v134
    %v352 = vpop.f32.mrf.mxu0
    %v353 = vadd.f32 0.0, %v352
    %v354 = vpop.f32.mrf.mxu0
    %v355 = vpop.f32.mrf.mxu0
    %v356 = vadd.f32 0.0, %v355
    %v357 = vpop.f32.mrf.mxu0
    %358 = vmatprep.mubr.bf16.mxu0 0
    %359 = vmatmul.mubr.bf16.gmra.mxu0 %v135
    %v360 = vpop.f32.mrf.mxu0
    %v361 = vadd.f32 0.0, %v360
    %v362 = vpop.f32.mrf.mxu0
    %v363 = vpop.f32.mrf.mxu0
    %v364 = vadd.f32 0.0, %v363
    %v365 = vpop.f32.mrf.mxu0
    %366 = vdwg.mxu0
    %v383 = vunpack.c.l.b16 %v222
    %v384 = vunpack.c.l.b16 %v223
    %v385 = vunpack.c.l.b16 %v224
    %v386 = vunpack.c.l.b16 %v225
    %v387 = vunpack.c.l.b16 %v226
    %v388 = vunpack.c.l.b16 %v227
    %v389 = vunpack.c.l.b16 %v228
    %v390 = vunpack.c.l.b16 %v229
    %v391 = vunpack.c.l.b16 %v230
    %v392 = vunpack.c.l.b16 %v231
    %v393 = vunpack.c.l.b16 %v232
    %v394 = vunpack.c.l.b16 %v233
    %v395 = vunpack.c.l.b16 %v234
    %v396 = vunpack.c.l.b16 %v235
    %v397 = vunpack.c.l.b16 %v236
    %v398 = vunpack.c.l.b16 %v237
    %v399 = vpack.c.b16 %v384, %v383
    %v400 = vpack.c.b16 %v386, %v385
    %v401 = vpack.c.b16 %v388, %v387
    %v402 = vpack.c.b16 %v390, %v389
    %v403 = vpack.c.b16 %v392, %v391
    %v404 = vpack.c.b16 %v394, %v393
    %v405 = vpack.c.b16 %v396, %v395
    %v406 = vpack.c.b16 %v398, %v397
    %415 = vmatprep.subr.bf16.mxu0 0
    %416 = vmatpush1.bf16.msra.mxu0 %v406
    %417 = vmatprep.subr.bf16.mxu0 0
    %418 = vmatpush1.bf16.msra.mxu0 %v405
    %419 = vmatprep.subr.bf16.mxu0 0
    %420 = vmatpush1.bf16.msra.mxu0 %v404
    %421 = vmatprep.subr.bf16.mxu0 0
    %422 = vmatpush1.bf16.msra.mxu0 %v403
    %423 = vmatprep.subr.bf16.mxu0 0
    %424 = vmatpush1.bf16.msra.mxu0 %v402
    %425 = vmatprep.subr.bf16.mxu0 0
    %426 = vmatpush1.bf16.msra.mxu0 %v401
    %427 = vmatprep.subr.bf16.mxu0 0
    %428 = vmatpush1.bf16.msra.mxu0 %v400
    %429 = vmatprep.subr.bf16.mxu0 0
    %430 = vmatpush1.bf16.msra.mxu0 %v399
    %431 = vmatprep.subr.bf16.mxu0 0
    %432 = vmatpush2.bf16.msra.mxu0 0
    %433 = vmatprep.subr.bf16.mxu0 0
    %434 = vmatpush2.bf16.msra.mxu0 0
    %435 = vmatprep.subr.bf16.mxu0 0
    %436 = vmatpush2.bf16.msra.mxu0 0
    %437 = vmatprep.subr.bf16.mxu0 0
    %438 = vmatpush2.bf16.msra.mxu0 0
    %439 = vmatprep.subr.bf16.mxu0 0
    %440 = vmatpush2.bf16.msra.mxu0 0
    %441 = vmatprep.subr.bf16.mxu0 0
    %442 = vmatpush2.bf16.msra.mxu0 0
    %443 = vmatprep.subr.bf16.mxu0 0
    %444 = vmatpush2.bf16.msra.mxu0 0
    %445 = vmatprep.subr.bf16.mxu0 0
    %446 = vmatpush2.bf16.msra.mxu0 0
    %447 = vmatprep.mubr.bf16.mxu0 0
    %448 = vmatmul.mubr.bf16.gmra.mxu0 %v218
    %v449 = vpop.f32.mrf.mxu0
    %v450 = vadd.f32 %v337, %v449
    %v451 = vpop.f32.mrf.mxu0
    %v452 = vpop.f32.mrf.mxu0
    %v453 = vadd.f32 %v340, %v452
    %v454 = vpop.f32.mrf.mxu0
    %455 = vmatprep.mubr.bf16.mxu0 0
    %456 = vmatmul.mubr.bf16.gmra.mxu0 %v219
    %v457 = vpop.f32.mrf.mxu0
    %v458 = vadd.f32 %v345, %v457
    %v459 = vpop.f32.mrf.mxu0
    %v460 = vpop.f32.mrf.mxu0
    %v461 = vadd.f32 %v348, %v460
    %v462 = vpop.f32.mrf.mxu0
    %463 = vmatprep.mubr.bf16.mxu0 0
    %464 = vmatmul.mubr.bf16.gmra.mxu0 %v220
    %v465 = vpop.f32.mrf.mxu0
    %v466 = vadd.f32 %v353, %v465
    %v467 = vpop.f32.mrf.mxu0
    %v468 = vpop.f32.mrf.mxu0
    %v469 = vadd.f32 %v356, %v468
    %v470 = vpop.f32.mrf.mxu0
    %471 = vmatprep.mubr.bf16.mxu0 0
    %472 = vmatmul.mubr.bf16.gmra.mxu0 %v221
    %v473 = vpop.f32.mrf.mxu0
    %v474 = vadd.f32 %v361, %v473
    %v475 = vpop.f32.mrf.mxu0
    %v476 = vpop.f32.mrf.mxu0
    %v477 = vadd.f32 %v364, %v476
    %v478 = vpop.f32.mrf.mxu0
    %479 = vdwg.mxu0
    %v480 = vmax.f32 %v450, 0.0
    %v481 = vmax.f32 %v453, 0.0
    %v482 = vmax.f32 %v458, 0.0
    %v483 = vmax.f32 %v461, 0.0
    %v484 = vmax.f32 %v466, 0.0
    %v485 = vmax.f32 %v469, 0.0
    %v486 = vmax.f32 %v474, 0.0
    %v487 = vmax.f32 %v477, 0.0
    %v488 = vadd.f32 %v480, %v481
    %v489 = vadd.f32 %v488, %v482
    %v490 = vadd.f32 %v489, %v483
    %v491 = vadd.f32 %v490, %v484
    %v492 = vadd.f32 %v491, %v485
    %v493 = vadd.f32 %v492, %v486
    %v494 = vadd.f32 %v493, %v487
    %v495 = vrot.slane %v494, 4
    %v496 = vadd.f32 %v494, %v495
    %v497 = vrot.slane %v496, 2
    %v498 = vadd.f32 %v496, %v497
    %v499 = vrot.slane %v498, 1
    %v500 = vadd.f32 %v498, %v499
    %v501 = vmul.f32 %v480, %v480
    %v502 = vmul.f32 %v481, %v481
    %v503 = vmul.f32 %v482, %v482
    %v504 = vmul.f32 %v483, %v483
    %v505 = vmul.f32 %v484, %v484
    %v506 = vmul.f32 %v485, %v485
    %v507 = vmul.f32 %v486, %v486
    %v508 = vmul.f32 %v487, %v487
    %v509 = vadd.f32 %v501, %v502
    %v510 = vadd.f32 %v509, %v503
    %v511 = vadd.f32 %v510, %v504
    %v512 = vadd.f32 %v511, %v505
    %v513 = vadd.f32 %v512, %v506
    %v514 = vadd.f32 %v513, %v507
    %v515 = vadd.f32 %v514, %v508
    %v516 = vrot.slane %v515, 4
    %v517 = vadd.f32 %v515, %v516
    %v518 = vrot.slane %v517, 2
    %v519 = vadd.f32 %v517, %v518
    %v520 = vrot.slane %v519, 1
    %v521 = vadd.f32 %v519, %v520
    %v522 = vmul.f32 %v500, 0.015625
    %v523 = vmul.f32 %v521, 0.015625
    %v524 = vmul.f32 %v522, %v522
    %v525 = vsub.f32 %v523, %v524
    %v526 = vld [vmem:[%s4] sm:$0x1]
    %v527 = vadd.f32 %v525, 1e-05
    %v528 = vrsqrt.pop %v527
    %v529 = vmul.f32 %v526, %v528
    %v530 = vld [vmem:[%s5] sm:$0x1]
    %v531 = vmul.f32 %v522, %v529
    %v532 = vsub.f32 %v530, %v531
    %v533 = vlaneseq
    %v534 = vshrl.u32 %v533, 7
    %v535 = vsub.s32 0, %v534
    %v536 = vrot.slane %v529, %v535
    %v537 = vmul.f32 %v480, %v536
    %v538 = vmul.f32 %v481, %v536
    %v539 = vmul.f32 %v482, %v536
    %v540 = vmul.f32 %v483, %v536
    %v541 = vmul.f32 %v484, %v536
    %v542 = vmul.f32 %v485, %v536
    %v543 = vmul.f32 %v486, %v536
    %v544 = vmul.f32 %v487, %v536
    %v545 = vlaneseq
    %v546 = vshrl.u32 %v545, 7
    %v547 = vsub.s32 0, %v546
    %v548 = vrot.slane %v532, %v547
    %v549 = vadd.f32 %v537, %v548
    %v550 = vadd.f32 %v538, %v548
    %v551 = vadd.f32 %v539, %v548
    %v552 = vadd.f32 %v540, %v548
    %v553 = vadd.f32 %v541, %v548
    %v554 = vadd.f32 %v542, %v548
    %v555 = vadd.f32 %v543, %v548
    %v556 = vadd.f32 %v544, %v548
    %v557 = vpack.c.bf16 %v550, %v549
    %v558 = vpack.c.bf16 %v552, %v551
    %v559 = vpack.c.bf16 %v554, %v553
    %v560 = vpack.c.bf16 %v556, %v555
    %561 = vmatprep.subr.bf16.mxu0 0
    %562 = vmatpush1.bf16.msra.mxu0 0
    %563 = vmatprep.subr.bf16.mxu0 0
    %564 = vmatpush1.bf16.msra.mxu0 0
    %565 = vmatprep.subr.bf16.mxu0 0
    %566 = vmatpush1.bf16.msra.mxu0 0
    %567 = vmatprep.subr.bf16.mxu0 0
    %568 = vmatpush1.bf16.msra.mxu0 0
    %569 = vmatprep.subr.bf16.mxu0 0
    %570 = vmatpush1.bf16.msra.mxu0 %v560
    %571 = vmatprep.subr.bf16.mxu0 0
    %572 = vmatpush1.bf16.msra.mxu0 %v559
    %573 = vmatprep.subr.bf16.mxu0 0
    %574 = vmatpush1.bf16.msra.mxu0 %v558
    %575 = vmatprep.subr.bf16.mxu0 0
    %576 = vmatpush1.bf16.msra.mxu0 %v557
    %577 = vmatprep.subr.bf16.mxu0 0
    %578 = vmatpush2.bf16.msra.mxu0 0
    %579 = vmatprep.subr.bf16.mxu0 0
    %580 = vmatpush2.bf16.msra.mxu0 0
    %581 = vmatprep.subr.bf16.mxu0 0
    %582 = vmatpush2.bf16.msra.mxu0 0
    %583 = vmatprep.subr.bf16.mxu0 0
    %584 = vmatpush2.bf16.msra.mxu0 0
    %585 = vmatprep.subr.bf16.mxu0 0
    %586 = vmatpush2.bf16.msra.mxu0 0
    %587 = vmatprep.subr.bf16.mxu0 0
    %588 = vmatpush2.bf16.msra.mxu0 0
    %589 = vmatprep.subr.bf16.mxu0 0
    %590 = vmatpush2.bf16.msra.mxu0 0
    %591 = vmatprep.subr.bf16.mxu0 0
    %592 = vmatpush2.bf16.msra.mxu0 0
    %593 = vmatprep.mubr.bf16.mxu0 0
    %594 = vmatmul.mubr.bf16.gmra.mxu0 %v142
    %v595 = vpop.f32.mrf.mxu0
    %v596 = vadd.f32 0.0, %v595
    %v597 = vpop.f32.mrf.mxu0
    %v598 = vpop.f32.mrf.mxu0
    %v599 = vadd.f32 0.0, %v598
    %v600 = vpop.f32.mrf.mxu0
    %601 = vmatprep.mubr.bf16.mxu0 0
    %602 = vmatmul.mubr.bf16.gmra.mxu0 %v145
    %v603 = vpop.f32.mrf.mxu0
    %v604 = vadd.f32 0.0, %v603
    %v605 = vpop.f32.mrf.mxu0
    %v606 = vpop.f32.mrf.mxu0
    %v607 = vadd.f32 0.0, %v606
    %v608 = vpop.f32.mrf.mxu0
    %609 = vmatprep.mubr.bf16.mxu0 0
    %610 = vmatmul.mubr.bf16.gmra.mxu0 %v148
    %v611 = vpop.f32.mrf.mxu0
    %v612 = vadd.f32 0.0, %v611
    %v613 = vpop.f32.mrf.mxu0
    %v614 = vpop.f32.mrf.mxu0
    %v615 = vadd.f32 0.0, %v614
    %v616 = vpop.f32.mrf.mxu0
    %617 = vmatprep.mubr.bf16.mxu0 0
    %618 = vmatmul.mubr.bf16.gmra.mxu0 %v151
    %v619 = vpop.f32.mrf.mxu0
    %v620 = vadd.f32 0.0, %v619
    %v621 = vpop.f32.mrf.mxu0
    %v622 = vpop.f32.mrf.mxu0
    %v623 = vadd.f32 0.0, %v622
    %v624 = vpop.f32.mrf.mxu0
    %625 = vdwg.mxu0
    %v626 = vpack.c.bf16 %v599, %v596
    %v627 = vpack.c.bf16 %v607, %v604
    %v628 = vpack.c.bf16 %v615, %v612
    %v629 = vpack.c.bf16 %v623, %v620
    %s630 = scalar_lea.vmem [#allocation7], 64
    %v631 = vld [vmem:[%s630] sm:$0xf]
    %v632 = vld [vmem:[%s630 + $0x4] sm:$0xf]
    %v633 = vld [vmem:[%s630 + $0x8] sm:$0xf]
    %v634 = vld [vmem:[%s630 + $0xc] sm:$0xf]
    %v635 = vld [vmem:[%s630 + $0x10] sm:$0xf]
    %v636 = vld [vmem:[%s630 + $0x14] sm:$0xf]
    %v637 = vld [vmem:[%s630 + $0x18] sm:$0xf]
    %v638 = vld [vmem:[%s630 + $0x1c] sm:$0xf]
    %v639 = vld [vmem:[%s630 + $0x20] sm:$0xf]
    %v640 = vld [vmem:[%s630 + $0x24] sm:$0xf]
    %v641 = vld [vmem:[%s630 + $0x28] sm:$0xf]
    %v642 = vld [vmem:[%s630 + $0x2c] sm:$0xf]
    %v643 = vld [vmem:[%s630 + $0x30] sm:$0xf]
    %v644 = vld [vmem:[%s630 + $0x34] sm:$0xf]
    %v645 = vld [vmem:[%s630 + $0x38] sm:$0xf]
    %v646 = vld [vmem:[%s630 + $0x3c] sm:$0xf]
    %s647 = scalar_lea.vmem [#allocation8], 64
    %v648 = vld [vmem:[%s647] sm:$0xf]
    %v649 = vld [vmem:[%s647 + $0x4] sm:$0xf]
    %v650 = vld [vmem:[%s647 + $0x8] sm:$0xf]
    %v651 = vld [vmem:[%s647 + $0xc] sm:$0xf]
    %v652 = vld [vmem:[%s647 + $0x10] sm:$0xf]
    %v653 = vld [vmem:[%s647 + $0x14] sm:$0xf]
    %v654 = vld [vmem:[%s647 + $0x18] sm:$0xf]
    %v655 = vld [vmem:[%s647 + $0x1c] sm:$0xf]
    %v656 = vld [vmem:[%s647 + $0x20] sm:$0xf]
    %v657 = vld [vmem:[%s647 + $0x24] sm:$0xf]
    %v658 = vld [vmem:[%s647 + $0x28] sm:$0xf]
    %v659 = vld [vmem:[%s647 + $0x2c] sm:$0xf]
    %v660 = vld [vmem:[%s647 + $0x30] sm:$0xf]
    %v661 = vld [vmem:[%s647 + $0x34] sm:$0xf]
    %v662 = vld [vmem:[%s647 + $0x38] sm:$0xf]
    %v663 = vld [vmem:[%s647 + $0x3c] sm:$0xf]
    %v680 = vunpack.c.l.b16 %v648
    %v681 = vunpack.c.l.b16 %v649
    %v682 = vunpack.c.l.b16 %v650
    %v683 = vunpack.c.l.b16 %v651
    %v684 = vunpack.c.l.b16 %v652
    %v685 = vunpack.c.l.b16 %v653
    %v686 = vunpack.c.l.b16 %v654
    %v687 = vunpack.c.l.b16 %v655
    %v688 = vunpack.c.l.b16 %v656
    %v689 = vunpack.c.l.b16 %v657
    %v690 = vunpack.c.l.b16 %v658
    %v691 = vunpack.c.l.b16 %v659
    %v692 = vunpack.c.l.b16 %v660
    %v693 = vunpack.c.l.b16 %v661
    %v694 = vunpack.c.l.b16 %v662
    %v695 = vunpack.c.l.b16 %v663
    %v696 = vpack.c.b16 %v681, %v680
    %v697 = vpack.c.b16 %v683, %v682
    %v698 = vpack.c.b16 %v685, %v684
    %v699 = vpack.c.b16 %v687, %v686
    %v700 = vpack.c.b16 %v689, %v688
    %v701 = vpack.c.b16 %v691, %v690
    %v702 = vpack.c.b16 %v693, %v692
    %v703 = vpack.c.b16 %v695, %v694
    %712 = vmatprep.subr.bf16.mxu0 0
    %713 = vmatpush1.bf16.msra.mxu0 %v703
    %714 = vmatprep.subr.bf16.mxu0 0
    %715 = vmatpush1.bf16.msra.mxu0 %v702
    %716 = vmatprep.subr.bf16.mxu0 0
    %717 = vmatpush1.bf16.msra.mxu0 %v701
    %718 = vmatprep.subr.bf16.mxu0 0
    %719 = vmatpush1.bf16.msra.mxu0 %v700
    %720 = vmatprep.subr.bf16.mxu0 0
    %721 = vmatpush1.bf16.msra.mxu0 %v699
    %722 = vmatprep.subr.bf16.mxu0 0
    %723 = vmatpush1.bf16.msra.mxu0 %v698
    %724 = vmatprep.subr.bf16.mxu0 0
    %725 = vmatpush1.bf16.msra.mxu0 %v697
    %726 = vmatprep.subr.bf16.mxu0 0
    %727 = vmatpush1.bf16.msra.mxu0 %v696
    %728 = vmatprep.subr.bf16.mxu0 0
    %729 = vmatpush2.bf16.msra.mxu0 0
    %730 = vmatprep.subr.bf16.mxu0 0
    %731 = vmatpush2.bf16.msra.mxu0 0
    %732 = vmatprep.subr.bf16.mxu0 0
    %733 = vmatpush2.bf16.msra.mxu0 0
    %734 = vmatprep.subr.bf16.mxu0 0
    %735 = vmatpush2.bf16.msra.mxu0 0
    %736 = vmatprep.subr.bf16.mxu0 0
    %737 = vmatpush2.bf16.msra.mxu0 0
    %738 = vmatprep.subr.bf16.mxu0 0
    %739 = vmatpush2.bf16.msra.mxu0 0
    %740 = vmatprep.subr.bf16.mxu0 0
    %741 = vmatpush2.bf16.msra.mxu0 0
    %742 = vmatprep.subr.bf16.mxu0 0
    %743 = vmatpush2.bf16.msra.mxu0 0
    %744 = vmatprep.mubr.bf16.mxu0 0
    %745 = vmatmul.mubr.bf16.gmra.mxu0 %v557
    %v746 = vpop.f32.mrf.mxu0
    %v747 = vadd.f32 0.0, %v746
    %v748 = vpop.f32.mrf.mxu0
    %v749 = vpop.f32.mrf.mxu0
    %v750 = vadd.f32 0.0, %v749
    %v751 = vpop.f32.mrf.mxu0
    %752 = vmatprep.mubr.bf16.mxu0 0
    %753 = vmatmul.mubr.bf16.gmra.mxu0 %v558
    %v754 = vpop.f32.mrf.mxu0
    %v755 = vadd.f32 0.0, %v754
    %v756 = vpop.f32.mrf.mxu0
    %v757 = vpop.f32.mrf.mxu0
    %v758 = vadd.f32 0.0, %v757
    %v759 = vpop.f32.mrf.mxu0
    %760 = vmatprep.mubr.bf16.mxu0 0
    %761 = vmatmul.mubr.bf16.gmra.mxu0 %v559
    %v762 = vpop.f32.mrf.mxu0
    %v763 = vadd.f32 0.0, %v762
    %v764 = vpop.f32.mrf.mxu0
    %v765 = vpop.f32.mrf.mxu0
    %v766 = vadd.f32 0.0, %v765
    %v767 = vpop.f32.mrf.mxu0
    %768 = vmatprep.mubr.bf16.mxu0 0
    %769 = vmatmul.mubr.bf16.gmra.mxu0 %v560
    %v770 = vpop.f32.mrf.mxu0
    %v771 = vadd.f32 0.0, %v770
    %v772 = vpop.f32.mrf.mxu0
    %v773 = vpop.f32.mrf.mxu0
    %v774 = vadd.f32 0.0, %v773
    %v775 = vpop.f32.mrf.mxu0
    %776 = vdwg.mxu0
    %v793 = vunpack.c.l.b16 %v631
    %v794 = vunpack.c.l.b16 %v632
    %v795 = vunpack.c.l.b16 %v633
    %v796 = vunpack.c.l.b16 %v634
    %v797 = vunpack.c.l.b16 %v635
    %v798 = vunpack.c.l.b16 %v636
    %v799 = vunpack.c.l.b16 %v637
    %v800 = vunpack.c.l.b16 %v638
    %v801 = vunpack.c.l.b16 %v639
    %v802 = vunpack.c.l.b16 %v640
    %v803 = vunpack.c.l.b16 %v641
    %v804 = vunpack.c.l.b16 %v642
    %v805 = vunpack.c.l.b16 %v643
    %v806 = vunpack.c.l.b16 %v644
    %v807 = vunpack.c.l.b16 %v645
    %v808 = vunpack.c.l.b16 %v646
    %v809 = vpack.c.b16 %v794, %v793
    %v810 = vpack.c.b16 %v796, %v795
    %v811 = vpack.c.b16 %v798, %v797
    %v812 = vpack.c.b16 %v800, %v799
    %v813 = vpack.c.b16 %v802, %v801
    %v814 = vpack.c.b16 %v804, %v803
    %v815 = vpack.c.b16 %v806, %v805
    %v816 = vpack.c.b16 %v808, %v807
    %825 = vmatprep.subr.bf16.mxu0 0
    %826 = vmatpush1.bf16.msra.mxu0 %v816
    %827 = vmatprep.subr.bf16.mxu0 0
    %828 = vmatpush1.bf16.msra.mxu0 %v815
    %829 = vmatprep.subr.bf16.mxu0 0
    %830 = vmatpush1.bf16.msra.mxu0 %v814
    %831 = vmatprep.subr.bf16.mxu0 0
    %832 = vmatpush1.bf16.msra.mxu0 %v813
    %833 = vmatprep.subr.bf16.mxu0 0
    %834 = vmatpush1.bf16.msra.mxu0 %v812
    %835 = vmatprep.subr.bf16.mxu0 0
    %836 = vmatpush1.bf16.msra.mxu0 %v811
    %837 = vmatprep.subr.bf16.mxu0 0
    %838 = vmatpush1.bf16.msra.mxu0 %v810
    %839 = vmatprep.subr.bf16.mxu0 0
    %840 = vmatpush1.bf16.msra.mxu0 %v809
    %841 = vmatprep.subr.bf16.mxu0 0
    %842 = vmatpush2.bf16.msra.mxu0 0
    %843 = vmatprep.subr.bf16.mxu0 0
    %844 = vmatpush2.bf16.msra.mxu0 0
    %845 = vmatprep.subr.bf16.mxu0 0
    %846 = vmatpush2.bf16.msra.mxu0 0
    %847 = vmatprep.subr.bf16.mxu0 0
    %848 = vmatpush2.bf16.msra.mxu0 0
    %849 = vmatprep.subr.bf16.mxu0 0
    %850 = vmatpush2.bf16.msra.mxu0 0
    %851 = vmatprep.subr.bf16.mxu0 0
    %852 = vmatpush2.bf16.msra.mxu0 0
    %853 = vmatprep.subr.bf16.mxu0 0
    %854 = vmatpush2.bf16.msra.mxu0 0
    %855 = vmatprep.subr.bf16.mxu0 0
    %856 = vmatpush2.bf16.msra.mxu0 0
    %857 = vmatprep.mubr.bf16.mxu0 0
    %858 = vmatmul.mubr.bf16.gmra.mxu0 %v626
    %v859 = vpop.f32.mrf.mxu0
    %v860 = vadd.f32 %v747, %v859
    %v861 = vpop.f32.mrf.mxu0
    %v862 = vpop.f32.mrf.mxu0
    %v863 = vadd.f32 %v750, %v862
    %v864 = vpop.f32.mrf.mxu0
    %865 = vmatprep.mubr.bf16.mxu0 0
    %866 = vmatmul.mubr.bf16.gmra.mxu0 %v627
    %v867 = vpop.f32.mrf.mxu0
    %v868 = vadd.f32 %v755, %v867
    %v869 = vpop.f32.mrf.mxu0
    %v870 = vpop.f32.mrf.mxu0
    %v871 = vadd.f32 %v758, %v870
    %v872 = vpop.f32.mrf.mxu0
    %873 = vmatprep.mubr.bf16.mxu0 0
    %874 = vmatmul.mubr.bf16.gmra.mxu0 %v628
    %v875 = vpop.f32.mrf.mxu0
    %v876 = vadd.f32 %v763, %v875
    %v877 = vpop.f32.mrf.mxu0
    %v878 = vpop.f32.mrf.mxu0
    %v879 = vadd.f32 %v766, %v878
    %v880 = vpop.f32.mrf.mxu0
    %881 = vmatprep.mubr.bf16.mxu0 0
    %882 = vmatmul.mubr.bf16.gmra.mxu0 %v629
    %v883 = vpop.f32.mrf.mxu0
    %v884 = vadd.f32 %v771, %v883
    %v885 = vpop.f32.mrf.mxu0
    %v886 = vpop.f32.mrf.mxu0
    %v887 = vadd.f32 %v774, %v886
    %v888 = vpop.f32.mrf.mxu0
    %889 = vdwg.mxu0
    %v890 = vmax.f32 %v860, 0.0
    %v891 = vmax.f32 %v863, 0.0
    %v892 = vmax.f32 %v868, 0.0
    %v893 = vmax.f32 %v871, 0.0
    %v894 = vmax.f32 %v876, 0.0
    %v895 = vmax.f32 %v879, 0.0
    %v896 = vmax.f32 %v884, 0.0
    %v897 = vmax.f32 %v887, 0.0
    %v898 = vadd.f32 %v890, %v891
    %v899 = vadd.f32 %v898, %v892
    %v900 = vadd.f32 %v899, %v893
    %v901 = vadd.f32 %v900, %v894
    %v902 = vadd.f32 %v901, %v895
    %v903 = vadd.f32 %v902, %v896
    %v904 = vadd.f32 %v903, %v897
    %v905 = vrot.slane %v904, 4
    %v906 = vadd.f32 %v904, %v905
    %v907 = vrot.slane %v906, 2
    %v908 = vadd.f32 %v906, %v907
    %v909 = vrot.slane %v908, 1
    %v910 = vadd.f32 %v908, %v909
    %v911 = vmul.f32 %v890, %v890
    %v912 = vmul.f32 %v891, %v891
    %v913 = vmul.f32 %v892, %v892
    %v914 = vmul.f32 %v893, %v893
    %v915 = vmul.f32 %v894, %v894
    %v916 = vmul.f32 %v895, %v895
    %v917 = vmul.f32 %v896, %v896
    %v918 = vmul.f32 %v897, %v897
    %v919 = vadd.f32 %v911, %v912
    %v920 = vadd.f32 %v919, %v913
    %v921 = vadd.f32 %v920, %v914
    %v922 = vadd.f32 %v921, %v915
    %v923 = vadd.f32 %v922, %v916
    %v924 = vadd.f32 %v923, %v917
    %v925 = vadd.f32 %v924, %v918
    %v926 = vrot.slane %v925, 4
    %v927 = vadd.f32 %v925, %v926
    %v928 = vrot.slane %v927, 2
    %v929 = vadd.f32 %v927, %v928
    %v930 = vrot.slane %v929, 1
    %v931 = vadd.f32 %v929, %v930
    %v932 = vmul.f32 %v910, 0.015625
    %v933 = vmul.f32 %v931, 0.015625
    %v934 = vmul.f32 %v932, %v932
    %v935 = vsub.f32 %v933, %v934
    %v936 = vld [vmem:[%s4 + $0x1] sm:$0x1]
    %v937 = vadd.f32 %v935, 1e-05
    %v938 = vrsqrt.pop %v937
    %v939 = vmul.f32 %v936, %v938
    %v940 = vld [vmem:[%s5 + $0x1] sm:$0x1]
    %v941 = vmul.f32 %v932, %v939
    %v942 = vsub.f32 %v940, %v941
    %v943 = vlaneseq
    %v944 = vshrl.u32 %v943, 7
    %v945 = vsub.s32 0, %v944
    %v946 = vrot.slane %v939, %v945
    %v947 = vmul.f32 %v890, %v946
    %v948 = vmul.f32 %v891, %v946
    %v949 = vmul.f32 %v892, %v946
    %v950 = vmul.f32 %v893, %v946
    %v951 = vmul.f32 %v894, %v946
    %v952 = vmul.f32 %v895, %v946
    %v953 = vmul.f32 %v896, %v946
    %v954 = vmul.f32 %v897, %v946
    %v955 = vlaneseq
    %v956 = vshrl.u32 %v955, 7
    %v957 = vsub.s32 0, %v956
    %v958 = vrot.slane %v942, %v957
    %v959 = vadd.f32 %v947, %v958
    %v960 = vadd.f32 %v948, %v958
    %v961 = vadd.f32 %v949, %v958
    %v962 = vadd.f32 %v950, %v958
    %v963 = vadd.f32 %v951, %v958
    %v964 = vadd.f32 %v952, %v958
    %v965 = vadd.f32 %v953, %v958
    %v966 = vadd.f32 %v954, %v958
    %v967 = vpack.c.bf16 %v960, %v959
    %v968 = vpack.c.bf16 %v962, %v961
    %v969 = vpack.c.bf16 %v964, %v963
    %v970 = vpack.c.bf16 %v966, %v965
    %971 = vmatprep.subr.bf16.mxu0 0
    %972 = vmatpush1.bf16.msra.mxu0 0
    %973 = vmatprep.subr.bf16.mxu0 0
    %974 = vmatpush1.bf16.msra.mxu0 0
    %975 = vmatprep.subr.bf16.mxu0 0
    %976 = vmatpush1.bf16.msra.mxu0 0
    %977 = vmatprep.subr.bf16.mxu0 0
    %978 = vmatpush1.bf16.msra.mxu0 0
    %979 = vmatprep.subr.bf16.mxu0 0
    %980 = vmatpush1.bf16.msra.mxu0 %v970
    %981 = vmatprep.subr.bf16.mxu0 0
    %982 = vmatpush1.bf16.msra.mxu0 %v969
    %983 = vmatprep.subr.bf16.mxu0 0
    %984 = vmatpush1.bf16.msra.mxu0 %v968
    %985 = vmatprep.subr.bf16.mxu0 0
    %986 = vmatpush1.bf16.msra.mxu0 %v967
    %987 = vmatprep.subr.bf16.mxu0 0
    %988 = vmatpush2.bf16.msra.mxu0 0
    %989 = vmatprep.subr.bf16.mxu0 0
    %990 = vmatpush2.bf16.msra.mxu0 0
    %991 = vmatprep.subr.bf16.mxu0 0
    %992 = vmatpush2.bf16.msra.mxu0 0
    %993 = vmatprep.subr.bf16.mxu0 0
    %994 = vmatpush2.bf16.msra.mxu0 0
    %995 = vmatprep.subr.bf16.mxu0 0
    %996 = vmatpush2.bf16.msra.mxu0 0
    %997 = vmatprep.subr.bf16.mxu0 0
    %998 = vmatpush2.bf16.msra.mxu0 0
    %999 = vmatprep.subr.bf16.mxu0 0
    %1000 = vmatpush2.bf16.msra.mxu0 0
    %1001 = vmatprep.subr.bf16.mxu0 0
    %1002 = vmatpush2.bf16.msra.mxu0 0
    %1003 = vmatprep.mubr.bf16.mxu0 0
    %1004 = vmatmul.mubr.bf16.gmra.mxu0 %v142
    %v1005 = vpop.f32.mrf.mxu0
    %v1006 = vadd.f32 0.0, %v1005
    %v1007 = vpop.f32.mrf.mxu0
    %v1008 = vpop.f32.mrf.mxu0
    %v1009 = vadd.f32 0.0, %v1008
    %v1010 = vpop.f32.mrf.mxu0
    %1011 = vmatprep.mubr.bf16.mxu0 0
    %1012 = vmatmul.mubr.bf16.gmra.mxu0 %v145
    %v1013 = vpop.f32.mrf.mxu0
    %v1014 = vadd.f32 0.0, %v1013
    %v1015 = vpop.f32.mrf.mxu0
    %v1016 = vpop.f32.mrf.mxu0
    %v1017 = vadd.f32 0.0, %v1016
    %v1018 = vpop.f32.mrf.mxu0
    %1019 = vmatprep.mubr.bf16.mxu0 0
    %1020 = vmatmul.mubr.bf16.gmra.mxu0 %v148
    %v1021 = vpop.f32.mrf.mxu0
    %v1022 = vadd.f32 0.0, %v1021
    %v1023 = vpop.f32.mrf.mxu0
    %v1024 = vpop.f32.mrf.mxu0
    %v1025 = vadd.f32 0.0, %v1024
    %v1026 = vpop.f32.mrf.mxu0
    %1027 = vmatprep.mubr.bf16.mxu0 0
    %1028 = vmatmul.mubr.bf16.gmra.mxu0 %v151
    %v1029 = vpop.f32.mrf.mxu0
    %v1030 = vadd.f32 0.0, %v1029
    %v1031 = vpop.f32.mrf.mxu0
    %v1032 = vpop.f32.mrf.mxu0
    %v1033 = vadd.f32 0.0, %v1032
    %v1034 = vpop.f32.mrf.mxu0
    %1035 = vdwg.mxu0
    %v1036 = vpack.c.bf16 %v1009, %v1006
    %v1037 = vpack.c.bf16 %v1017, %v1014
    %v1038 = vpack.c.bf16 %v1025, %v1022
    %v1039 = vpack.c.bf16 %v1033, %v1030
    %s1040 = scalar_lea.vmem [#allocation7], 128
    %v1041 = vld [vmem:[%s1040] sm:$0xf]
    %v1042 = vld [vmem:[%s1040 + $0x4] sm:$0xf]
    %v1043 = vld [vmem:[%s1040 + $0x8] sm:$0xf]
    %v1044 = vld [vmem:[%s1040 + $0xc] sm:$0xf]
    %v1045 = vld [vmem:[%s1040 + $0x10] sm:$0xf]
    %v1046 = vld [vmem:[%s1040 + $0x14] sm:$0xf]
    %v1047 = vld [vmem:[%s1040 + $0x18] sm:$0xf]
    %v1048 = vld [vmem:[%s1040 + $0x1c] sm:$0xf]
    %v1049 = vld [vmem:[%s1040 + $0x20] sm:$0xf]
    %v1050 = vld [vmem:[%s1040 + $0x24] sm:$0xf]
    %v1051 = vld [vmem:[%s1040 + $0x28] sm:$0xf]
    %v1052 = vld [vmem:[%s1040 + $0x2c] sm:$0xf]
    %v1053 = vld [vmem:[%s1040 + $0x30] sm:$0xf]
    %v1054 = vld [vmem:[%s1040 + $0x34] sm:$0xf]
    %v1055 = vld [vmem:[%s1040 + $0x38] sm:$0xf]
    %v1056 = vld [vmem:[%s1040 + $0x3c] sm:$0xf]
    %s1057 = scalar_lea.vmem [#allocation8], 128
    %v1058 = vld [vmem:[%s1057] sm:$0xf]
    %v1059 = vld [vmem:[%s1057 + $0x4] sm:$0xf]
    %v1060 = vld [vmem:[%s1057 + $0x8] sm:$0xf]
    %v1061 = vld [vmem:[%s1057 + $0xc] sm:$0xf]
    %v1062 = vld [vmem:[%s1057 + $0x10] sm:$0xf]
    %v1063 = vld [vmem:[%s1057 + $0x14] sm:$0xf]
    %v1064 = vld [vmem:[%s1057 + $0x18] sm:$0xf]
    %v1065 = vld [vmem:[%s1057 + $0x1c] sm:$0xf]
    %v1066 = vld [vmem:[%s1057 + $0x20] sm:$0xf]
    %v1067 = vld [vmem:[%s1057 + $0x24] sm:$0xf]
    %v1068 = vld [vmem:[%s1057 + $0x28] sm:$0xf]
    %v1069 = vld [vmem:[%s1057 + $0x2c] sm:$0xf]
    %v1070 = vld [vmem:[%s1057 + $0x30] sm:$0xf]
    %v1071 = vld [vmem:[%s1057 + $0x34] sm:$0xf]
    %v1072 = vld [vmem:[%s1057 + $0x38] sm:$0xf]
    %v1073 = vld [vmem:[%s1057 + $0x3c] sm:$0xf]
    %v1090 = vunpack.c.l.b16 %v1058
    %v1091 = vunpack.c.l.b16 %v1059
    %v1092 = vunpack.c.l.b16 %v1060
    %v1093 = vunpack.c.l.b16 %v1061
    %v1094 = vunpack.c.l.b16 %v1062
    %v1095 = vunpack.c.l.b16 %v1063
    %v1096 = vunpack.c.l.b16 %v1064
    %v1097 = vunpack.c.l.b16 %v1065
    %v1098 = vunpack.c.l.b16 %v1066
    %v1099 = vunpack.c.l.b16 %v1067
    %v1100 = vunpack.c.l.b16 %v1068
    %v1101 = vunpack.c.l.b16 %v1069
    %v1102 = vunpack.c.l.b16 %v1070
    %v1103 = vunpack.c.l.b16 %v1071
    %v1104 = vunpack.c.l.b16 %v1072
    %v1105 = vunpack.c.l.b16 %v1073
    %v1106 = vpack.c.b16 %v1091, %v1090
    %v1107 = vpack.c.b16 %v1093, %v1092
    %v1108 = vpack.c.b16 %v1095, %v1094
    %v1109 = vpack.c.b16 %v1097, %v1096
    %v1110 = vpack.c.b16 %v1099, %v1098
    %v1111 = vpack.c.b16 %v1101, %v1100
    %v1112 = vpack.c.b16 %v1103, %v1102
    %v1113 = vpack.c.b16 %v1105, %v1104
    %1122 = vmatprep.subr.bf16.mxu0 0
    %1123 = vmatpush1.bf16.msra.mxu0 %v1113
    %1124 = vmatprep.subr.bf16.mxu0 0
    %1125 = vmatpush1.bf16.msra.mxu0 %v1112
    %1126 = vmatprep.subr.bf16.mxu0 0
    %1127 = vmatpush1.bf16.msra.mxu0 %v1111
    %1128 = vmatprep.subr.bf16.mxu0 0
    %1129 = vmatpush1.bf16.msra.mxu0 %v1110
    %1130 = vmatprep.subr.bf16.mxu0 0
    %1131 = vmatpush1.bf16.msra.mxu0 %v1109
    %1132 = vmatprep.subr.bf16.mxu0 0
    %1133 = vmatpush1.bf16.msra.mxu0 %v1108
    %1134 = vmatprep.subr.bf16.mxu0 0
    %1135 = vmatpush1.bf16.msra.mxu0 %v1107
    %1136 = vmatprep.subr.bf16.mxu0 0
    %1137 = vmatpush1.bf16.msra.mxu0 %v1106
    %1138 = vmatprep.subr.bf16.mxu0 0
    %1139 = vmatpush2.bf16.msra.mxu0 0
    %1140 = vmatprep.subr.bf16.mxu0 0
    %1141 = vmatpush2.bf16.msra.mxu0 0
    %1142 = vmatprep.subr.bf16.mxu0 0
    %1143 = vmatpush2.bf16.msra.mxu0 0
    %1144 = vmatprep.subr.bf16.mxu0 0
    %1145 = vmatpush2.bf16.msra.mxu0 0
    %1146 = vmatprep.subr.bf16.mxu0 0
    %1147 = vmatpush2.bf16.msra.mxu0 0
    %1148 = vmatprep.subr.bf16.mxu0 0
    %1149 = vmatpush2.bf16.msra.mxu0 0
    %1150 = vmatprep.subr.bf16.mxu0 0
    %1151 = vmatpush2.bf16.msra.mxu0 0
    %1152 = vmatprep.subr.bf16.mxu0 0
    %1153 = vmatpush2.bf16.msra.mxu0 0
    %1154 = vmatprep.mubr.bf16.mxu0 0
    %1155 = vmatmul.mubr.bf16.gmra.mxu0 %v967
    %v1156 = vpop.f32.mrf.mxu0
    %v1157 = vadd.f32 0.0, %v1156
    %v1158 = vpop.f32.mrf.mxu0
    %v1159 = vpop.f32.mrf.mxu0
    %v1160 = vadd.f32 0.0, %v1159
    %v1161 = vpop.f32.mrf.mxu0
    %1162 = vmatprep.mubr.bf16.mxu0 0
    %1163 = vmatmul.mubr.bf16.gmra.mxu0 %v968
    %v1164 = vpop.f32.mrf.mxu0
    %v1165 = vadd.f32 0.0, %v1164
    %v1166 = vpop.f32.mrf.mxu0
    %v1167 = vpop.f32.mrf.mxu0
    %v1168 = vadd.f32 0.0, %v1167
    %v1169 = vpop.f32.mrf.mxu0
    %1170 = vmatprep.mubr.bf16.mxu0 0
    %1171 = vmatmul.mubr.bf16.gmra.mxu0 %v969
    %v1172 = vpop.f32.mrf.mxu0
    %v1173 = vadd.f32 0.0, %v1172
    %v1174 = vpop.f32.mrf.mxu0
    %v1175 = vpop.f32.mrf.mxu0
    %v1176 = vadd.f32 0.0, %v1175
    %v1177 = vpop.f32.mrf.mxu0
    %1178 = vmatprep.mubr.bf16.mxu0 0
    %1179 = vmatmul.mubr.bf16.gmra.mxu0 %v970
    %v1180 = vpop.f32.mrf.mxu0
    %v1181 = vadd.f32 0.0, %v1180
    %v1182 = vpop.f32.mrf.mxu0
    %v1183 = vpop.f32.mrf.mxu0
    %v1184 = vadd.f32 0.0, %v1183
    %v1185 = vpop.f32.mrf.mxu0
    %1186 = vdwg.mxu0
    %v1203 = vunpack.c.l.b16 %v1041
    %v1204 = vunpack.c.l.b16 %v1042
    %v1205 = vunpack.c.l.b16 %v1043
    %v1206 = vunpack.c.l.b16 %v1044
    %v1207 = vunpack.c.l.b16 %v1045
    %v1208 = vunpack.c.l.b16 %v1046
    %v1209 = vunpack.c.l.b16 %v1047
    %v1210 = vunpack.c.l.b16 %v1048
    %v1211 = vunpack.c.l.b16 %v1049
    %v1212 = vunpack.c.l.b16 %v1050
    %v1213 = vunpack.c.l.b16 %v1051
    %v1214 = vunpack.c.l.b16 %v1052
    %v1215 = vunpack.c.l.b16 %v1053
    %v1216 = vunpack.c.l.b16 %v1054
    %v1217 = vunpack.c.l.b16 %v1055
    %v1218 = vunpack.c.l.b16 %v1056
    %v1219 = vpack.c.b16 %v1204, %v1203
    %v1220 = vpack.c.b16 %v1206, %v1205
    %v1221 = vpack.c.b16 %v1208, %v1207
    %v1222 = vpack.c.b16 %v1210, %v1209
    %v1223 = vpack.c.b16 %v1212, %v1211
    %v1224 = vpack.c.b16 %v1214, %v1213
    %v1225 = vpack.c.b16 %v1216, %v1215
    %v1226 = vpack.c.b16 %v1218, %v1217
    %1235 = vmatprep.subr.bf16.mxu0 0
    %1236 = vmatpush1.bf16.msra.mxu0 %v1226
    %1237 = vmatprep.subr.bf16.mxu0 0
    %1238 = vmatpush1.bf16.msra.mxu0 %v1225
    %1239 = vmatprep.subr.bf16.mxu0 0
    %1240 = vmatpush1.bf16.msra.mxu0 %v1224
    %1241 = vmatprep.subr.bf16.mxu0 0
    %1242 = vmatpush1.bf16.msra.mxu0 %v1223
    %1243 = vmatprep.subr.bf16.mxu0 0
    %1244 = vmatpush1.bf16.msra.mxu0 %v1222
    %1245 = vmatprep.subr.bf16.mxu0 0
    %1246 = vmatpush1.bf16.msra.mxu0 %v1221
    %1247 = vmatprep.subr.bf16.mxu0 0
    %1248 = vmatpush1.bf16.msra.mxu0 %v1220
    %1249 = vmatprep.subr.bf16.mxu0 0
    %1250 = vmatpush1.bf16.msra.mxu0 %v1219
    %1251 = vmatprep.subr.bf16.mxu0 0
    %1252 = vmatpush2.bf16.msra.mxu0 0
    %1253 = vmatprep.subr.bf16.mxu0 0
    %1254 = vmatpush2.bf16.msra.mxu0 0
    %1255 = vmatprep.subr.bf16.mxu0 0
    %1256 = vmatpush2.bf16.msra.mxu0 0
    %1257 = vmatprep.subr.bf16.mxu0 0
    %1258 = vmatpush2.bf16.msra.mxu0 0
    %1259 = vmatprep.subr.bf16.mxu0 0
    %1260 = vmatpush2.bf16.msra.mxu0 0
    %1261 = vmatprep.subr.bf16.mxu0 0
    %1262 = vmatpush2.bf16.msra.mxu0 0
    %1263 = vmatprep.subr.bf16.mxu0 0
    %1264 = vmatpush2.bf16.msra.mxu0 0
    %1265 = vmatprep.subr.bf16.mxu0 0
    %1266 = vmatpush2.bf16.msra.mxu0 0
    %1267 = vmatprep.mubr.bf16.mxu0 0
    %1268 = vmatmul.mubr.bf16.gmra.mxu0 %v1036
    %v1269 = vpop.f32.mrf.mxu0
    %v1270 = vadd.f32 %v1157, %v1269
    %v1271 = vpop.f32.mrf.mxu0
    %v1272 = vpop.f32.mrf.mxu0
    %v1273 = vadd.f32 %v1160, %v1272
    %v1274 = vpop.f32.mrf.mxu0
    %1275 = vmatprep.mubr.bf16.mxu0 0
    %1276 = vmatmul.mubr.bf16.gmra.mxu0 %v1037
    %v1277 = vpop.f32.mrf.mxu0
    %v1278 = vadd.f32 %v1165, %v1277
    %v1279 = vpop.f32.mrf.mxu0
    %v1280 = vpop.f32.mrf.mxu0
    %v1281 = vadd.f32 %v1168, %v1280
    %v1282 = vpop.f32.mrf.mxu0
    %1283 = vmatprep.mubr.bf16.mxu0 0
    %1284 = vmatmul.mubr.bf16.gmra.mxu0 %v1038
    %v1285 = vpop.f32.mrf.mxu0
    %v1286 = vadd.f32 %v1173, %v1285
    %v1287 = vpop.f32.mrf.mxu0
    %v1288 = vpop.f32.mrf.mxu0
    %v1289 = vadd.f32 %v1176, %v1288
    %v1290 = vpop.f32.mrf.mxu0
    %1291 = vmatprep.mubr.bf16.mxu0 0
    %1292 = vmatmul.mubr.bf16.gmra.mxu0 %v1039
    %v1293 = vpop.f32.mrf.mxu0
    %v1294 = vadd.f32 %v1181, %v1293
    %v1295 = vpop.f32.mrf.mxu0
    %v1296 = vpop.f32.mrf.mxu0
    %v1297 = vadd.f32 %v1184, %v1296
    %v1298 = vpop.f32.mrf.mxu0
    %1299 = vdwg.mxu0
    %v1300 = vmax.f32 %v1270, 0.0
    %v1301 = vmax.f32 %v1273, 0.0
    %v1302 = vmax.f32 %v1278, 0.0
    %v1303 = vmax.f32 %v1281, 0.0
    %v1304 = vmax.f32 %v1286, 0.0
    %v1305 = vmax.f32 %v1289, 0.0
    %v1306 = vmax.f32 %v1294, 0.0
    %v1307 = vmax.f32 %v1297, 0.0
    %v1308 = vadd.f32 %v1300, %v1301
    %v1309 = vadd.f32 %v1308, %v1302
    %v1310 = vadd.f32 %v1309, %v1303
    %v1311 = vadd.f32 %v1310, %v1304
    %v1312 = vadd.f32 %v1311, %v1305
    %v1313 = vadd.f32 %v1312, %v1306
    %v1314 = vadd.f32 %v1313, %v1307
    %v1315 = vrot.slane %v1314, 4
    %v1316 = vadd.f32 %v1314, %v1315
    %v1317 = vrot.slane %v1316, 2
    %v1318 = vadd.f32 %v1316, %v1317
    %v1319 = vrot.slane %v1318, 1
    %v1320 = vadd.f32 %v1318, %v1319
    %v1321 = vmul.f32 %v1300, %v1300
    %v1322 = vmul.f32 %v1301, %v1301
    %v1323 = vmul.f32 %v1302, %v1302
    %v1324 = vmul.f32 %v1303, %v1303
    %v1325 = vmul.f32 %v1304, %v1304
    %v1326 = vmul.f32 %v1305, %v1305
    %v1327 = vmul.f32 %v1306, %v1306
    %v1328 = vmul.f32 %v1307, %v1307
    %v1329 = vadd.f32 %v1321, %v1322
    %v1330 = vadd.f32 %v1329, %v1323
    %v1331 = vadd.f32 %v1330, %v1324
    %v1332 = vadd.f32 %v1331, %v1325
    %v1333 = vadd.f32 %v1332, %v1326
    %v1334 = vadd.f32 %v1333, %v1327
    %v1335 = vadd.f32 %v1334, %v1328
    %v1336 = vrot.slane %v1335, 4
    %v1337 = vadd.f32 %v1335, %v1336
    %v1338 = vrot.slane %v1337, 2
    %v1339 = vadd.f32 %v1337, %v1338
    %v1340 = vrot.slane %v1339, 1
    %v1341 = vadd.f32 %v1339, %v1340
    %v1342 = vmul.f32 %v1320, 0.015625
    %v1343 = vmul.f32 %v1341, 0.015625
    %v1344 = vmul.f32 %v1342, %v1342
    %v1345 = vsub.f32 %v1343, %v1344
    %v1346 = vld [vmem:[%s4 + $0x2] sm:$0x1]
    %v1347 = vadd.f32 %v1345, 1e-05
    %v1348 = vrsqrt.pop %v1347
    %v1349 = vmul.f32 %v1346, %v1348
    %v1350 = vld [vmem:[%s5 + $0x2] sm:$0x1]
    %v1351 = vmul.f32 %v1342, %v1349
    %v1352 = vsub.f32 %v1350, %v1351
    %v1353 = vlaneseq
    %v1354 = vshrl.u32 %v1353, 7
    %v1355 = vsub.s32 0, %v1354
    %v1356 = vrot.slane %v1349, %v1355
    %v1357 = vmul.f32 %v1300, %v1356
    %v1358 = vmul.f32 %v1301, %v1356
    %v1359 = vmul.f32 %v1302, %v1356
    %v1360 = vmul.f32 %v1303, %v1356
    %v1361 = vmul.f32 %v1304, %v1356
    %v1362 = vmul.f32 %v1305, %v1356
    %v1363 = vmul.f32 %v1306, %v1356
    %v1364 = vmul.f32 %v1307, %v1356
    %v1365 = vlaneseq
    %v1366 = vshrl.u32 %v1365, 7
    %v1367 = vsub.s32 0, %v1366
    %v1368 = vrot.slane %v1352, %v1367
    %v1369 = vadd.f32 %v1357, %v1368
    %v1370 = vadd.f32 %v1358, %v1368
    %v1371 = vadd.f32 %v1359, %v1368
    %v1372 = vadd.f32 %v1360, %v1368
    %v1373 = vadd.f32 %v1361, %v1368
    %v1374 = vadd.f32 %v1362, %v1368
    %v1375 = vadd.f32 %v1363, %v1368
    %v1376 = vadd.f32 %v1364, %v1368
    %v1377 = vpack.c.bf16 %v1370, %v1369
    %v1378 = vpack.c.bf16 %v1372, %v1371
    %v1379 = vpack.c.bf16 %v1374, %v1373
    %v1380 = vpack.c.bf16 %v1376, %v1375
    %1381 = vmatprep.subr.bf16.mxu0 0
    %1382 = vmatpush1.bf16.msra.mxu0 0
    %1383 = vmatprep.subr.bf16.mxu0 0
    %1384 = vmatpush1.bf16.msra.mxu0 0
    %1385 = vmatprep.subr.bf16.mxu0 0
    %1386 = vmatpush1.bf16.msra.mxu0 0
    %1387 = vmatprep.subr.bf16.mxu0 0
    %1388 = vmatpush1.bf16.msra.mxu0 0
    %1389 = vmatprep.subr.bf16.mxu0 0
    %1390 = vmatpush1.bf16.msra.mxu0 %v1380
    %1391 = vmatprep.subr.bf16.mxu0 0
    %1392 = vmatpush1.bf16.msra.mxu0 %v1379
    %1393 = vmatprep.subr.bf16.mxu0 0
    %1394 = vmatpush1.bf16.msra.mxu0 %v1378
    %1395 = vmatprep.subr.bf16.mxu0 0
    %1396 = vmatpush1.bf16.msra.mxu0 %v1377
    %1397 = vmatprep.subr.bf16.mxu0 0
    %1398 = vmatpush2.bf16.msra.mxu0 0
    %1399 = vmatprep.subr.bf16.mxu0 0
    %1400 = vmatpush2.bf16.msra.mxu0 0
    %1401 = vmatprep.subr.bf16.mxu0 0
    %1402 = vmatpush2.bf16.msra.mxu0 0
    %1403 = vmatprep.subr.bf16.mxu0 0
    %1404 = vmatpush2.bf16.msra.mxu0 0
    %1405 = vmatprep.subr.bf16.mxu0 0
    %1406 = vmatpush2.bf16.msra.mxu0 0
    %1407 = vmatprep.subr.bf16.mxu0 0
    %1408 = vmatpush2.bf16.msra.mxu0 0
    %1409 = vmatprep.subr.bf16.mxu0 0
    %1410 = vmatpush2.bf16.msra.mxu0 0
    %1411 = vmatprep.subr.bf16.mxu0 0
    %1412 = vmatpush2.bf16.msra.mxu0 0
    %1413 = vmatprep.mubr.bf16.mxu0 0
    %1414 = vmatmul.mubr.bf16.gmra.mxu0 %v142
    %v1415 = vpop.f32.mrf.mxu0
    %v1416 = vadd.f32 0.0, %v1415
    %v1417 = vpop.f32.mrf.mxu0
    %v1418 = vpop.f32.mrf.mxu0
    %v1419 = vadd.f32 0.0, %v1418
    %v1420 = vpop.f32.mrf.mxu0
    %1421 = vmatprep.mubr.bf16.mxu0 0
    %1422 = vmatmul.mubr.bf16.gmra.mxu0 %v145
    %v1423 = vpop.f32.mrf.mxu0
    %v1424 = vadd.f32 0.0, %v1423
    %v1425 = vpop.f32.mrf.mxu0
    %v1426 = vpop.f32.mrf.mxu0
    %v1427 = vadd.f32 0.0, %v1426
    %v1428 = vpop.f32.mrf.mxu0
    %1429 = vmatprep.mubr.bf16.mxu0 0
    %1430 = vmatmul.mubr.bf16.gmra.mxu0 %v148
    %v1431 = vpop.f32.mrf.mxu0
    %v1432 = vadd.f32 0.0, %v1431
    %v1433 = vpop.f32.mrf.mxu0
    %v1434 = vpop.f32.mrf.mxu0
    %v1435 = vadd.f32 0.0, %v1434
    %v1436 = vpop.f32.mrf.mxu0
    %1437 = vmatprep.mubr.bf16.mxu0 0
    %1438 = vmatmul.mubr.bf16.gmra.mxu0 %v151
    %v1439 = vpop.f32.mrf.mxu0
    %v1440 = vadd.f32 0.0, %v1439
    %v1441 = vpop.f32.mrf.mxu0
    %v1442 = vpop.f32.mrf.mxu0
    %v1443 = vadd.f32 0.0, %v1442
    %v1444 = vpop.f32.mrf.mxu0
    %1445 = vdwg.mxu0
    %v1446 = vpack.c.bf16 %v1419, %v1416
    %v1447 = vpack.c.bf16 %v1427, %v1424
    %v1448 = vpack.c.bf16 %v1435, %v1432
    %v1449 = vpack.c.bf16 %v1443, %v1440
    %s1450 = scalar_lea.vmem [#allocation7], 192
    %v1451 = vld [vmem:[%s1450] sm:$0xf]
    %v1452 = vld [vmem:[%s1450 + $0x4] sm:$0xf]
    %v1453 = vld [vmem:[%s1450 + $0x8] sm:$0xf]
    %v1454 = vld [vmem:[%s1450 + $0xc] sm:$0xf]
    %v1455 = vld [vmem:[%s1450 + $0x10] sm:$0xf]
    %v1456 = vld [vmem:[%s1450 + $0x14] sm:$0xf]
    %v1457 = vld [vmem:[%s1450 + $0x18] sm:$0xf]
    %v1458 = vld [vmem:[%s1450 + $0x1c] sm:$0xf]
    %v1459 = vld [vmem:[%s1450 + $0x20] sm:$0xf]
    %v1460 = vld [vmem:[%s1450 + $0x24] sm:$0xf]
    %v1461 = vld [vmem:[%s1450 + $0x28] sm:$0xf]
    %v1462 = vld [vmem:[%s1450 + $0x2c] sm:$0xf]
    %v1463 = vld [vmem:[%s1450 + $0x30] sm:$0xf]
    %v1464 = vld [vmem:[%s1450 + $0x34] sm:$0xf]
    %v1465 = vld [vmem:[%s1450 + $0x38] sm:$0xf]
    %v1466 = vld [vmem:[%s1450 + $0x3c] sm:$0xf]
    %s1467 = scalar_lea.vmem [#allocation8], 192
    %v1468 = vld [vmem:[%s1467] sm:$0xf]
    %v1469 = vld [vmem:[%s1467 + $0x4] sm:$0xf]
    %v1470 = vld [vmem:[%s1467 + $0x8] sm:$0xf]
    %v1471 = vld [vmem:[%s1467 + $0xc] sm:$0xf]
    %v1472 = vld [vmem:[%s1467 + $0x10] sm:$0xf]
    %v1473 = vld [vmem:[%s1467 + $0x14] sm:$0xf]
    %v1474 = vld [vmem:[%s1467 + $0x18] sm:$0xf]
    %v1475 = vld [vmem:[%s1467 + $0x1c] sm:$0xf]
    %v1476 = vld [vmem:[%s1467 + $0x20] sm:$0xf]
    %v1477 = vld [vmem:[%s1467 + $0x24] sm:$0xf]
    %v1478 = vld [vmem:[%s1467 + $0x28] sm:$0xf]
    %v1479 = vld [vmem:[%s1467 + $0x2c] sm:$0xf]
    %v1480 = vld [vmem:[%s1467 + $0x30] sm:$0xf]
    %v1481 = vld [vmem:[%s1467 + $0x34] sm:$0xf]
    %v1482 = vld [vmem:[%s1467 + $0x38] sm:$0xf]
    %v1483 = vld [vmem:[%s1467 + $0x3c] sm:$0xf]
    %v1500 = vunpack.c.l.b16 %v1468
    %v1501 = vunpack.c.l.b16 %v1469
    %v1502 = vunpack.c.l.b16 %v1470
    %v1503 = vunpack.c.l.b16 %v1471
    %v1504 = vunpack.c.l.b16 %v1472
    %v1505 = vunpack.c.l.b16 %v1473
    %v1506 = vunpack.c.l.b16 %v1474
    %v1507 = vunpack.c.l.b16 %v1475
    %v1508 = vunpack.c.l.b16 %v1476
    %v1509 = vunpack.c.l.b16 %v1477
    %v1510 = vunpack.c.l.b16 %v1478
    %v1511 = vunpack.c.l.b16 %v1479
    %v1512 = vunpack.c.l.b16 %v1480
    %v1513 = vunpack.c.l.b16 %v1481
    %v1514 = vunpack.c.l.b16 %v1482
    %v1515 = vunpack.c.l.b16 %v1483
    %v1516 = vpack.c.b16 %v1501, %v1500
    %v1517 = vpack.c.b16 %v1503, %v1502
    %v1518 = vpack.c.b16 %v1505, %v1504
    %v1519 = vpack.c.b16 %v1507, %v1506
    %v1520 = vpack.c.b16 %v1509, %v1508
    %v1521 = vpack.c.b16 %v1511, %v1510
    %v1522 = vpack.c.b16 %v1513, %v1512
    %v1523 = vpack.c.b16 %v1515, %v1514
    %1532 = vmatprep.subr.bf16.mxu0 0
    %1533 = vmatpush1.bf16.msra.mxu0 %v1523
    %1534 = vmatprep.subr.bf16.mxu0 0
    %1535 = vmatpush1.bf16.msra.mxu0 %v1522
    %1536 = vmatprep.subr.bf16.mxu0 0
    %1537 = vmatpush1.bf16.msra.mxu0 %v1521
    %1538 = vmatprep.subr.bf16.mxu0 0
    %1539 = vmatpush1.bf16.msra.mxu0 %v1520
    %1540 = vmatprep.subr.bf16.mxu0 0
    %1541 = vmatpush1.bf16.msra.mxu0 %v1519
    %1542 = vmatprep.subr.bf16.mxu0 0
    %1543 = vmatpush1.bf16.msra.mxu0 %v1518
    %1544 = vmatprep.subr.bf16.mxu0 0
    %1545 = vmatpush1.bf16.msra.mxu0 %v1517
    %1546 = vmatprep.subr.bf16.mxu0 0
    %1547 = vmatpush1.bf16.msra.mxu0 %v1516
    %1548 = vmatprep.subr.bf16.mxu0 0
    %1549 = vmatpush2.bf16.msra.mxu0 0
    %1550 = vmatprep.subr.bf16.mxu0 0
    %1551 = vmatpush2.bf16.msra.mxu0 0
    %1552 = vmatprep.subr.bf16.mxu0 0
    %1553 = vmatpush2.bf16.msra.mxu0 0
    %1554 = vmatprep.subr.bf16.mxu0 0
    %1555 = vmatpush2.bf16.msra.mxu0 0
    %1556 = vmatprep.subr.bf16.mxu0 0
    %1557 = vmatpush2.bf16.msra.mxu0 0
    %1558 = vmatprep.subr.bf16.mxu0 0
    %1559 = vmatpush2.bf16.msra.mxu0 0
    %1560 = vmatprep.subr.bf16.mxu0 0
    %1561 = vmatpush2.bf16.msra.mxu0 0
    %1562 = vmatprep.subr.bf16.mxu0 0
    %1563 = vmatpush2.bf16.msra.mxu0 0
    %1564 = vmatprep.mubr.bf16.mxu0 0
    %1565 = vmatmul.mubr.bf16.gmra.mxu0 %v1377
    %v1566 = vpop.f32.mrf.mxu0
    %v1567 = vadd.f32 0.0, %v1566
    %v1568 = vpop.f32.mrf.mxu0
    %v1569 = vpop.f32.mrf.mxu0
    %v1570 = vadd.f32 0.0, %v1569
    %v1571 = vpop.f32.mrf.mxu0
    %1572 = vmatprep.mubr.bf16.mxu0 0
    %1573 = vmatmul.mubr.bf16.gmra.mxu0 %v1378
    %v1574 = vpop.f32.mrf.mxu0
    %v1575 = vadd.f32 0.0, %v1574
    %v1576 = vpop.f32.mrf.mxu0
    %v1577 = vpop.f32.mrf.mxu0
    %v1578 = vadd.f32 0.0, %v1577
    %v1579 = vpop.f32.mrf.mxu0
    %1580 = vmatprep.mubr.bf16.mxu0 0
    %1581 = vmatmul.mubr.bf16.gmra.mxu0 %v1379
    %v1582 = vpop.f32.mrf.mxu0
    %v1583 = vadd.f32 0.0, %v1582
    %v1584 = vpop.f32.mrf.mxu0
    %v1585 = vpop.f32.mrf.mxu0
    %v1586 = vadd.f32 0.0, %v1585
    %v1587 = vpop.f32.mrf.mxu0
    %1588 = vmatprep.mubr.bf16.mxu0 0
    %1589 = vmatmul.mubr.bf16.gmra.mxu0 %v1380
    %v1590 = vpop.f32.mrf.mxu0
    %v1591 = vadd.f32 0.0, %v1590
    %v1592 = vpop.f32.mrf.mxu0
    %v1593 = vpop.f32.mrf.mxu0
    %v1594 = vadd.f32 0.0, %v1593
    %v1595 = vpop.f32.mrf.mxu0
    %1596 = vdwg.mxu0
    %v1613 = vunpack.c.l.b16 %v1451
    %v1614 = vunpack.c.l.b16 %v1452
    %v1615 = vunpack.c.l.b16 %v1453
    %v1616 = vunpack.c.l.b16 %v1454
    %v1617 = vunpack.c.l.b16 %v1455
    %v1618 = vunpack.c.l.b16 %v1456
    %v1619 = vunpack.c.l.b16 %v1457
    %v1620 = vunpack.c.l.b16 %v1458
    %v1621 = vunpack.c.l.b16 %v1459
    %v1622 = vunpack.c.l.b16 %v1460
    %v1623 = vunpack.c.l.b16 %v1461
    %v1624 = vunpack.c.l.b16 %v1462
    %v1625 = vunpack.c.l.b16 %v1463
    %v1626 = vunpack.c.l.b16 %v1464
    %v1627 = vunpack.c.l.b16 %v1465
    %v1628 = vunpack.c.l.b16 %v1466
    %v1629 = vpack.c.b16 %v1614, %v1613
    %v1630 = vpack.c.b16 %v1616, %v1615
    %v1631 = vpack.c.b16 %v1618, %v1617
    %v1632 = vpack.c.b16 %v1620, %v1619
    %v1633 = vpack.c.b16 %v1622, %v1621
    %v1634 = vpack.c.b16 %v1624, %v1623
    %v1635 = vpack.c.b16 %v1626, %v1625
    %v1636 = vpack.c.b16 %v1628, %v1627
    %1645 = vmatprep.subr.bf16.mxu0 0
    %1646 = vmatpush1.bf16.msra.mxu0 %v1636
    %1647 = vmatprep.subr.bf16.mxu0 0
    %1648 = vmatpush1.bf16.msra.mxu0 %v1635
    %1649 = vmatprep.subr.bf16.mxu0 0
    %1650 = vmatpush1.bf16.msra.mxu0 %v1634
    %1651 = vmatprep.subr.bf16.mxu0 0
    %1652 = vmatpush1.bf16.msra.mxu0 %v1633
    %1653 = vmatprep.subr.bf16.mxu0 0
    %1654 = vmatpush1.bf16.msra.mxu0 %v1632
    %1655 = vmatprep.subr.bf16.mxu0 0
    %1656 = vmatpush1.bf16.msra.mxu0 %v1631
    %1657 = vmatprep.subr.bf16.mxu0 0
    %1658 = vmatpush1.bf16.msra.mxu0 %v1630
    %1659 = vmatprep.subr.bf16.mxu0 0
    %1660 = vmatpush1.bf16.msra.mxu0 %v1629
    %1661 = vmatprep.subr.bf16.mxu0 0
    %1662 = vmatpush2.bf16.msra.mxu0 0
    %1663 = vmatprep.subr.bf16.mxu0 0
    %1664 = vmatpush2.bf16.msra.mxu0 0
    %1665 = vmatprep.subr.bf16.mxu0 0
    %1666 = vmatpush2.bf16.msra.mxu0 0
    %1667 = vmatprep.subr.bf16.mxu0 0
    %1668 = vmatpush2.bf16.msra.mxu0 0
    %1669 = vmatprep.subr.bf16.mxu0 0
    %1670 = vmatpush2.bf16.msra.mxu0 0
    %1671 = vmatprep.subr.bf16.mxu0 0
    %1672 = vmatpush2.bf16.msra.mxu0 0
    %1673 = vmatprep.subr.bf16.mxu0 0
    %1674 = vmatpush2.bf16.msra.mxu0 0
    %1675 = vmatprep.subr.bf16.mxu0 0
    %1676 = vmatpush2.bf16.msra.mxu0 0
    %1677 = vmatprep.mubr.bf16.mxu0 0
    %1678 = vmatmul.mubr.bf16.gmra.mxu0 %v1446
    %v1679 = vpop.f32.mrf.mxu0
    %v1680 = vadd.f32 %v1567, %v1679
    %v1681 = vpop.f32.mrf.mxu0
    %v1682 = vpop.f32.mrf.mxu0
    %v1683 = vadd.f32 %v1570, %v1682
    %v1684 = vpop.f32.mrf.mxu0
    %1685 = vmatprep.mubr.bf16.mxu0 0
    %1686 = vmatmul.mubr.bf16.gmra.mxu0 %v1447
    %v1687 = vpop.f32.mrf.mxu0
    %v1688 = vadd.f32 %v1575, %v1687
    %v1689 = vpop.f32.mrf.mxu0
    %v1690 = vpop.f32.mrf.mxu0
    %v1691 = vadd.f32 %v1578, %v1690
    %v1692 = vpop.f32.mrf.mxu0
    %1693 = vmatprep.mubr.bf16.mxu0 0
    %1694 = vmatmul.mubr.bf16.gmra.mxu0 %v1448
    %v1695 = vpop.f32.mrf.mxu0
    %v1696 = vadd.f32 %v1583, %v1695
    %v1697 = vpop.f32.mrf.mxu0
    %v1698 = vpop.f32.mrf.mxu0
    %v1699 = vadd.f32 %v1586, %v1698
    %v1700 = vpop.f32.mrf.mxu0
    %1701 = vmatprep.mubr.bf16.mxu0 0
    %1702 = vmatmul.mubr.bf16.gmra.mxu0 %v1449
    %v1703 = vpop.f32.mrf.mxu0
    %v1704 = vadd.f32 %v1591, %v1703
    %v1705 = vpop.f32.mrf.mxu0
    %v1706 = vpop.f32.mrf.mxu0
    %v1707 = vadd.f32 %v1594, %v1706
    %v1708 = vpop.f32.mrf.mxu0
    %1709 = vdwg.mxu0
    %v1710 = vmax.f32 %v1680, 0.0
    %v1711 = vmax.f32 %v1683, 0.0
    %v1712 = vmax.f32 %v1688, 0.0
    %v1713 = vmax.f32 %v1691, 0.0
    %v1714 = vmax.f32 %v1696, 0.0
    %v1715 = vmax.f32 %v1699, 0.0
    %v1716 = vmax.f32 %v1704, 0.0
    %v1717 = vmax.f32 %v1707, 0.0
    %v1718 = vadd.f32 %v1710, %v1711
    %v1719 = vadd.f32 %v1718, %v1712
    %v1720 = vadd.f32 %v1719, %v1713
    %v1721 = vadd.f32 %v1720, %v1714
    %v1722 = vadd.f32 %v1721, %v1715
    %v1723 = vadd.f32 %v1722, %v1716
    %v1724 = vadd.f32 %v1723, %v1717
    %v1725 = vrot.slane %v1724, 4
    %v1726 = vadd.f32 %v1724, %v1725
    %v1727 = vrot.slane %v1726, 2
    %v1728 = vadd.f32 %v1726, %v1727
    %v1729 = vrot.slane %v1728, 1
    %v1730 = vadd.f32 %v1728, %v1729
    %v1731 = vmul.f32 %v1710, %v1710
    %v1732 = vmul.f32 %v1711, %v1711
    %v1733 = vmul.f32 %v1712, %v1712
    %v1734 = vmul.f32 %v1713, %v1713
    %v1735 = vmul.f32 %v1714, %v1714
    %v1736 = vmul.f32 %v1715, %v1715
    %v1737 = vmul.f32 %v1716, %v1716
    %v1738 = vmul.f32 %v1717, %v1717
    %v1739 = vadd.f32 %v1731, %v1732
    %v1740 = vadd.f32 %v1739, %v1733
    %v1741 = vadd.f32 %v1740, %v1734
    %v1742 = vadd.f32 %v1741, %v1735
    %v1743 = vadd.f32 %v1742, %v1736
    %v1744 = vadd.f32 %v1743, %v1737
    %v1745 = vadd.f32 %v1744, %v1738
    %v1746 = vrot.slane %v1745, 4
    %v1747 = vadd.f32 %v1745, %v1746
    %v1748 = vrot.slane %v1747, 2
    %v1749 = vadd.f32 %v1747, %v1748
    %v1750 = vrot.slane %v1749, 1
    %v1751 = vadd.f32 %v1749, %v1750
    %v1752 = vmul.f32 %v1730, 0.015625
    %v1753 = vmul.f32 %v1751, 0.015625
    %v1754 = vmul.f32 %v1752, %v1752
    %v1755 = vsub.f32 %v1753, %v1754
    %v1756 = vld [vmem:[%s4 + $0x3] sm:$0x1]
    %v1757 = vadd.f32 %v1755, 1e-05
    %v1758 = vrsqrt.pop %v1757
    %v1759 = vmul.f32 %v1756, %v1758
    %v1760 = vld [vmem:[%s5 + $0x3] sm:$0x1]
    %v1761 = vmul.f32 %v1752, %v1759
    %v1762 = vsub.f32 %v1760, %v1761
    %v1763 = vlaneseq
    %v1764 = vshrl.u32 %v1763, 7
    %v1765 = vsub.s32 0, %v1764
    %v1766 = vrot.slane %v1759, %v1765
    %v1767 = vmul.f32 %v1710, %v1766
    %v1768 = vmul.f32 %v1711, %v1766
    %v1769 = vmul.f32 %v1712, %v1766
    %v1770 = vmul.f32 %v1713, %v1766
    %v1771 = vmul.f32 %v1714, %v1766
    %v1772 = vmul.f32 %v1715, %v1766
    %v1773 = vmul.f32 %v1716, %v1766
    %v1774 = vmul.f32 %v1717, %v1766
    %v1775 = vlaneseq
    %v1776 = vshrl.u32 %v1775, 7
    %v1777 = vsub.s32 0, %v1776
    %v1778 = vrot.slane %v1762, %v1777
    %v1779 = vadd.f32 %v1767, %v1778
    %v1780 = vadd.f32 %v1768, %v1778
    %v1781 = vadd.f32 %v1769, %v1778
    %v1782 = vadd.f32 %v1770, %v1778
    %v1783 = vadd.f32 %v1771, %v1778
    %v1784 = vadd.f32 %v1772, %v1778
    %v1785 = vadd.f32 %v1773, %v1778
    %v1786 = vadd.f32 %v1774, %v1778
    %v1787 = vpack.c.bf16 %v1780, %v1779
    %v1788 = vpack.c.bf16 %v1782, %v1781
    %v1789 = vpack.c.bf16 %v1784, %v1783
    %v1790 = vpack.c.bf16 %v1786, %v1785
    %1791 = vmatprep.subr.bf16.mxu0 0
    %1792 = vmatpush1.bf16.msra.mxu0 0
    %1793 = vmatprep.subr.bf16.mxu0 0
    %1794 = vmatpush1.bf16.msra.mxu0 0
    %1795 = vmatprep.subr.bf16.mxu0 0
    %1796 = vmatpush1.bf16.msra.mxu0 0
    %1797 = vmatprep.subr.bf16.mxu0 0
    %1798 = vmatpush1.bf16.msra.mxu0 0
    %1799 = vmatprep.subr.bf16.mxu0 0
    %1800 = vmatpush1.bf16.msra.mxu0 %v1790
    %1801 = vmatprep.subr.bf16.mxu0 0
    %1802 = vmatpush1.bf16.msra.mxu0 %v1789
    %1803 = vmatprep.subr.bf16.mxu0 0
    %1804 = vmatpush1.bf16.msra.mxu0 %v1788
    %1805 = vmatprep.subr.bf16.mxu0 0
    %1806 = vmatpush1.bf16.msra.mxu0 %v1787
    %1807 = vmatprep.subr.bf16.mxu0 0
    %1808 = vmatpush2.bf16.msra.mxu0 0
    %1809 = vmatprep.subr.bf16.mxu0 0
    %1810 = vmatpush2.bf16.msra.mxu0 0
    %1811 = vmatprep.subr.bf16.mxu0 0
    %1812 = vmatpush2.bf16.msra.mxu0 0
    %1813 = vmatprep.subr.bf16.mxu0 0
    %1814 = vmatpush2.bf16.msra.mxu0 0
    %1815 = vmatprep.subr.bf16.mxu0 0
    %1816 = vmatpush2.bf16.msra.mxu0 0
    %1817 = vmatprep.subr.bf16.mxu0 0
    %1818 = vmatpush2.bf16.msra.mxu0 0
    %1819 = vmatprep.subr.bf16.mxu0 0
    %1820 = vmatpush2.bf16.msra.mxu0 0
    %1821 = vmatprep.subr.bf16.mxu0 0
    %1822 = vmatpush2.bf16.msra.mxu0 0
    %1823 = vmatprep.mubr.bf16.mxu0 0
    %1824 = vmatmul.mubr.bf16.gmra.mxu0 %v142
    %v1825 = vpop.f32.mrf.mxu0
    %v1826 = vadd.f32 0.0, %v1825
    %v1827 = vpop.f32.mrf.mxu0
    %v1828 = vpop.f32.mrf.mxu0
    %v1829 = vadd.f32 0.0, %v1828
    %v1830 = vpop.f32.mrf.mxu0
    %1831 = vmatprep.mubr.bf16.mxu0 0
    %1832 = vmatmul.mubr.bf16.gmra.mxu0 %v145
    %v1833 = vpop.f32.mrf.mxu0
    %v1834 = vadd.f32 0.0, %v1833
    %v1835 = vpop.f32.mrf.mxu0
    %v1836 = vpop.f32.mrf.mxu0
    %v1837 = vadd.f32 0.0, %v1836
    %v1838 = vpop.f32.mrf.mxu0
    %1839 = vmatprep.mubr.bf16.mxu0 0
    %1840 = vmatmul.mubr.bf16.gmra.mxu0 %v148
    %v1841 = vpop.f32.mrf.mxu0
    %v1842 = vadd.f32 0.0, %v1841
    %v1843 = vpop.f32.mrf.mxu0
    %v1844 = vpop.f32.mrf.mxu0
    %v1845 = vadd.f32 0.0, %v1844
    %v1846 = vpop.f32.mrf.mxu0
    %1847 = vmatprep.mubr.bf16.mxu0 0
    %1848 = vmatmul.mubr.bf16.gmra.mxu0 %v151
    %v1849 = vpop.f32.mrf.mxu0
    %v1850 = vadd.f32 0.0, %v1849
    %v1851 = vpop.f32.mrf.mxu0
    %v1852 = vpop.f32.mrf.mxu0
    %v1853 = vadd.f32 0.0, %v1852
    %v1854 = vpop.f32.mrf.mxu0
    %1855 = vdwg.mxu0
    %v1856 = vpack.c.bf16 %v1829, %v1826
    %v1857 = vpack.c.bf16 %v1837, %v1834
    %v1858 = vpack.c.bf16 %v1845, %v1842
    %v1859 = vpack.c.bf16 %v1853, %v1850
    %s1860 = scalar_lea.vmem [#allocation7], 256
    %v1861 = vld [vmem:[%s1860] sm:$0xf]
    %v1862 = vld [vmem:[%s1860 + $0x4] sm:$0xf]
    %v1863 = vld [vmem:[%s1860 + $0x8] sm:$0xf]
    %v1864 = vld [vmem:[%s1860 + $0xc] sm:$0xf]
    %v1865 = vld [vmem:[%s1860 + $0x10] sm:$0xf]
    %v1866 = vld [vmem:[%s1860 + $0x14] sm:$0xf]
    %v1867 = vld [vmem:[%s1860 + $0x18] sm:$0xf]
    %v1868 = vld [vmem:[%s1860 + $0x1c] sm:$0xf]
    %v1869 = vld [vmem:[%s1860 + $0x20] sm:$0xf]
    %v1870 = vld [vmem:[%s1860 + $0x24] sm:$0xf]
    %v1871 = vld [vmem:[%s1860 + $0x28] sm:$0xf]
    %v1872 = vld [vmem:[%s1860 + $0x2c] sm:$0xf]
    %v1873 = vld [vmem:[%s1860 + $0x30] sm:$0xf]
    %v1874 = vld [vmem:[%s1860 + $0x34] sm:$0xf]
    %v1875 = vld [vmem:[%s1860 + $0x38] sm:$0xf]
    %v1876 = vld [vmem:[%s1860 + $0x3c] sm:$0xf]
    %s1877 = scalar_lea.vmem [#allocation8], 256
    %v1878 = vld [vmem:[%s1877] sm:$0xf]
    %v1879 = vld [vmem:[%s1877 + $0x4] sm:$0xf]
    %v1880 = vld [vmem:[%s1877 + $0x8] sm:$0xf]
    %v1881 = vld [vmem:[%s1877 + $0xc] sm:$0xf]
    %v1882 = vld [vmem:[%s1877 + $0x10] sm:$0xf]
    %v1883 = vld [vmem:[%s1877 + $0x14] sm:$0xf]
    %v1884 = vld [vmem:[%s1877 + $0x18] sm:$0xf]
    %v1885 = vld [vmem:[%s1877 + $0x1c] sm:$0xf]
    %v1886 = vld [vmem:[%s1877 + $0x20] sm:$0xf]
    %v1887 = vld [vmem:[%s1877 + $0x24] sm:$0xf]
    %v1888 = vld [vmem:[%s1877 + $0x28] sm:$0xf]
    %v1889 = vld [vmem:[%s1877 + $0x2c] sm:$0xf]
    %v1890 = vld [vmem:[%s1877 + $0x30] sm:$0xf]
    %v1891 = vld [vmem:[%s1877 + $0x34] sm:$0xf]
    %v1892 = vld [vmem:[%s1877 + $0x38] sm:$0xf]
    %v1893 = vld [vmem:[%s1877 + $0x3c] sm:$0xf]
    %v1910 = vunpack.c.l.b16 %v1878
    %v1911 = vunpack.c.l.b16 %v1879
    %v1912 = vunpack.c.l.b16 %v1880
    %v1913 = vunpack.c.l.b16 %v1881
    %v1914 = vunpack.c.l.b16 %v1882
    %v1915 = vunpack.c.l.b16 %v1883
    %v1916 = vunpack.c.l.b16 %v1884
    %v1917 = vunpack.c.l.b16 %v1885
    %v1918 = vunpack.c.l.b16 %v1886
    %v1919 = vunpack.c.l.b16 %v1887
    %v1920 = vunpack.c.l.b16 %v1888
    %v1921 = vunpack.c.l.b16 %v1889
    %v1922 = vunpack.c.l.b16 %v1890
    %v1923 = vunpack.c.l.b16 %v1891
    %v1924 = vunpack.c.l.b16 %v1892
    %v1925 = vunpack.c.l.b16 %v1893
    %v1926 = vpack.c.b16 %v1911, %v1910
    %v1927 = vpack.c.b16 %v1913, %v1912
    %v1928 = vpack.c.b16 %v1915, %v1914
    %v1929 = vpack.c.b16 %v1917, %v1916
    %v1930 = vpack.c.b16 %v1919, %v1918
    %v1931 = vpack.c.b16 %v1921, %v1920
    %v1932 = vpack.c.b16 %v1923, %v1922
    %v1933 = vpack.c.b16 %v1925, %v1924
    %1942 = vmatprep.subr.bf16.mxu0 0
    %1943 = vmatpush1.bf16.msra.mxu0 %v1933
    %1944 = vmatprep.subr.bf16.mxu0 0
    %1945 = vmatpush1.bf16.msra.mxu0 %v1932
    %1946 = vmatprep.subr.bf16.mxu0 0
    %1947 = vmatpush1.bf16.msra.mxu0 %v1931
    %1948 = vmatprep.subr.bf16.mxu0 0
    %1949 = vmatpush1.bf16.msra.mxu0 %v1930
    %1950 = vmatprep.subr.bf16.mxu0 0
    %1951 = vmatpush1.bf16.msra.mxu0 %v1929
    %1952 = vmatprep.subr.bf16.mxu0 0
    %1953 = vmatpush1.bf16.msra.mxu0 %v1928
    %1954 = vmatprep.subr.bf16.mxu0 0
    %1955 = vmatpush1.bf16.msra.mxu0 %v1927
    %1956 = vmatprep.subr.bf16.mxu0 0
    %1957 = vmatpush1.bf16.msra.mxu0 %v1926
    %1958 = vmatprep.subr.bf16.mxu0 0
    %1959 = vmatpush2.bf16.msra.mxu0 0
    %1960 = vmatprep.subr.bf16.mxu0 0
    %1961 = vmatpush2.bf16.msra.mxu0 0
    %1962 = vmatprep.subr.bf16.mxu0 0
    %1963 = vmatpush2.bf16.msra.mxu0 0
    %1964 = vmatprep.subr.bf16.mxu0 0
    %1965 = vmatpush2.bf16.msra.mxu0 0
    %1966 = vmatprep.subr.bf16.mxu0 0
    %1967 = vmatpush2.bf16.msra.mxu0 0
    %1968 = vmatprep.subr.bf16.mxu0 0
    %1969 = vmatpush2.bf16.msra.mxu0 0
    %1970 = vmatprep.subr.bf16.mxu0 0
    %1971 = vmatpush2.bf16.msra.mxu0 0
    %1972 = vmatprep.subr.bf16.mxu0 0
    %1973 = vmatpush2.bf16.msra.mxu0 0
    %1974 = vmatprep.mubr.bf16.mxu0 0
    %1975 = vmatmul.mubr.bf16.gmra.mxu0 %v1787
    %v1976 = vpop.f32.mrf.mxu0
    %v1977 = vadd.f32 0.0, %v1976
    %v1978 = vpop.f32.mrf.mxu0
    %v1979 = vpop.f32.mrf.mxu0
    %v1980 = vadd.f32 0.0, %v1979
    %v1981 = vpop.f32.mrf.mxu0
    %1982 = vmatprep.mubr.bf16.mxu0 0
    %1983 = vmatmul.mubr.bf16.gmra.mxu0 %v1788
    %v1984 = vpop.f32.mrf.mxu0
    %v1985 = vadd.f32 0.0, %v1984
    %v1986 = vpop.f32.mrf.mxu0
    %v1987 = vpop.f32.mrf.mxu0
    %v1988 = vadd.f32 0.0, %v1987
    %v1989 = vpop.f32.mrf.mxu0
    %1990 = vmatprep.mubr.bf16.mxu0 0
    %1991 = vmatmul.mubr.bf16.gmra.mxu0 %v1789
    %v1992 = vpop.f32.mrf.mxu0
    %v1993 = vadd.f32 0.0, %v1992
    %v1994 = vpop.f32.mrf.mxu0
    %v1995 = vpop.f32.mrf.mxu0
    %v1996 = vadd.f32 0.0, %v1995
    %v1997 = vpop.f32.mrf.mxu0
    %1998 = vmatprep.mubr.bf16.mxu0 0
    %1999 = vmatmul.mubr.bf16.gmra.mxu0 %v1790
    %v2000 = vpop.f32.mrf.mxu0
    %v2001 = vadd.f32 0.0, %v2000
    %v2002 = vpop.f32.mrf.mxu0
    %v2003 = vpop.f32.mrf.mxu0
    %v2004 = vadd.f32 0.0, %v2003
    %v2005 = vpop.f32.mrf.mxu0
    %2006 = vdwg.mxu0
    %v2023 = vunpack.c.l.b16 %v1861
    %v2024 = vunpack.c.l.b16 %v1862
    %v2025 = vunpack.c.l.b16 %v1863
    %v2026 = vunpack.c.l.b16 %v1864
    %v2027 = vunpack.c.l.b16 %v1865
    %v2028 = vunpack.c.l.b16 %v1866
    %v2029 = vunpack.c.l.b16 %v1867
    %v2030 = vunpack.c.l.b16 %v1868
    %v2031 = vunpack.c.l.b16 %v1869
    %v2032 = vunpack.c.l.b16 %v1870
    %v2033 = vunpack.c.l.b16 %v1871
    %v2034 = vunpack.c.l.b16 %v1872
    %v2035 = vunpack.c.l.b16 %v1873
    %v2036 = vunpack.c.l.b16 %v1874
    %v2037 = vunpack.c.l.b16 %v1875
    %v2038 = vunpack.c.l.b16 %v1876
    %v2039 = vpack.c.b16 %v2024, %v2023
    %v2040 = vpack.c.b16 %v2026, %v2025
    %v2041 = vpack.c.b16 %v2028, %v2027
    %v2042 = vpack.c.b16 %v2030, %v2029
    %v2043 = vpack.c.b16 %v2032, %v2031
    %v2044 = vpack.c.b16 %v2034, %v2033
    %v2045 = vpack.c.b16 %v2036, %v2035
    %v2046 = vpack.c.b16 %v2038, %v2037
    %2055 = vmatprep.subr.bf16.mxu0 0
    %2056 = vmatpush1.bf16.msra.mxu0 %v2046
    %2057 = vmatprep.subr.bf16.mxu0 0
    %2058 = vmatpush1.bf16.msra.mxu0 %v2045
    %2059 = vmatprep.subr.bf16.mxu0 0
    %2060 = vmatpush1.bf16.msra.mxu0 %v2044
    %2061 = vmatprep.subr.bf16.mxu0 0
    %2062 = vmatpush1.bf16.msra.mxu0 %v2043
    %2063 = vmatprep.subr.bf16.mxu0 0
    %2064 = vmatpush1.bf16.msra.mxu0 %v2042
    %2065 = vmatprep.subr.bf16.mxu0 0
    %2066 = vmatpush1.bf16.msra.mxu0 %v2041
    %2067 = vmatprep.subr.bf16.mxu0 0
    %2068 = vmatpush1.bf16.msra.mxu0 %v2040
    %2069 = vmatprep.subr.bf16.mxu0 0
    %2070 = vmatpush1.bf16.msra.mxu0 %v2039
    %2071 = vmatprep.subr.bf16.mxu0 0
    %2072 = vmatpush2.bf16.msra.mxu0 0
    %2073 = vmatprep.subr.bf16.mxu0 0
    %2074 = vmatpush2.bf16.msra.mxu0 0
    %2075 = vmatprep.subr.bf16.mxu0 0
    %2076 = vmatpush2.bf16.msra.mxu0 0
    %2077 = vmatprep.subr.bf16.mxu0 0
    %2078 = vmatpush2.bf16.msra.mxu0 0
    %2079 = vmatprep.subr.bf16.mxu0 0
    %2080 = vmatpush2.bf16.msra.mxu0 0
    %2081 = vmatprep.subr.bf16.mxu0 0
    %2082 = vmatpush2.bf16.msra.mxu0 0
    %2083 = vmatprep.subr.bf16.mxu0 0
    %2084 = vmatpush2.bf16.msra.mxu0 0
    %2085 = vmatprep.subr.bf16.mxu0 0
    %2086 = vmatpush2.bf16.msra.mxu0 0
    %2087 = vmatprep.mubr.bf16.mxu0 0
    %2088 = vmatmul.mubr.bf16.gmra.mxu0 %v1856
    %v2089 = vpop.f32.mrf.mxu0
    %v2090 = vadd.f32 %v1977, %v2089
    %v2091 = vpop.f32.mrf.mxu0
    %v2092 = vpop.f32.mrf.mxu0
    %v2093 = vadd.f32 %v1980, %v2092
    %v2094 = vpop.f32.mrf.mxu0
    %2095 = vmatprep.mubr.bf16.mxu0 0
    %2096 = vmatmul.mubr.bf16.gmra.mxu0 %v1857
    %v2097 = vpop.f32.mrf.mxu0
    %v2098 = vadd.f32 %v1985, %v2097
    %v2099 = vpop.f32.mrf.mxu0
    %v2100 = vpop.f32.mrf.mxu0
    %v2101 = vadd.f32 %v1988, %v2100
    %v2102 = vpop.f32.mrf.mxu0
    %2103 = vmatprep.mubr.bf16.mxu0 0
    %2104 = vmatmul.mubr.bf16.gmra.mxu0 %v1858
    %v2105 = vpop.f32.mrf.mxu0
    %v2106 = vadd.f32 %v1993, %v2105
    %v2107 = vpop.f32.mrf.mxu0
    %v2108 = vpop.f32.mrf.mxu0
    %v2109 = vadd.f32 %v1996, %v2108
    %v2110 = vpop.f32.mrf.mxu0
    %2111 = vmatprep.mubr.bf16.mxu0 0
    %2112 = vmatmul.mubr.bf16.gmra.mxu0 %v1859
    %v2113 = vpop.f32.mrf.mxu0
    %v2114 = vadd.f32 %v2001, %v2113
    %v2115 = vpop.f32.mrf.mxu0
    %v2116 = vpop.f32.mrf.mxu0
    %v2117 = vadd.f32 %v2004, %v2116
    %v2118 = vpop.f32.mrf.mxu0
    %2119 = vdwg.mxu0
    %v2120 = vlaneseq
    %v2121 = vand.u32 %v2120, 127
    %vm2122 = vcmp.lt.s32.totalorder %v2121, 4
    %v2123 = vsel %vm2122, %v2090, -1e+30
    %v2124 = vsel %vm2122, %v2093, -1e+30
    %v2125 = vsel %vm2122, %v2098, -1e+30
    %v2126 = vsel %vm2122, %v2101, -1e+30
    %v2127 = vsel %vm2122, %v2106, -1e+30
    %v2128 = vsel %vm2122, %v2109, -1e+30
    %v2129 = vsel %vm2122, %v2114, -1e+30
    %v2130 = vsel %vm2122, %v2117, -1e+30
    %2131 = vmax.xlane.f32.xlu0 %v2123
    %v2132 = vpop.xlane.xlu0 %2131
    %2133 = vmax.xlane.f32.xlu0 %v2124
    %v2134 = vpop.xlane.xlu0 %2133
    %2135 = vmax.xlane.f32.xlu0 %v2125
    %v2136 = vpop.xlane.xlu0 %2135
    %2137 = vmax.xlane.f32.xlu0 %v2126
    %v2138 = vpop.xlane.xlu0 %2137
    %2139 = vmax.xlane.f32.xlu0 %v2127
    %v2140 = vpop.xlane.xlu0 %2139
    %2141 = vmax.xlane.f32.xlu0 %v2128
    %v2142 = vpop.xlane.xlu0 %2141
    %2143 = vmax.xlane.f32.xlu0 %v2129
    %v2144 = vpop.xlane.xlu0 %2143
    %2145 = vmax.xlane.f32.xlu0 %v2130
    %v2146 = vpop.xlane.xlu0 %2145
    %v2147 = vsub.f32 %v2123, %v2132
    %v2148 = vsub.f32 %v2124, %v2134
    %v2149 = vsub.f32 %v2125, %v2136
    %v2150 = vsub.f32 %v2126, %v2138
    %v2151 = vsub.f32 %v2127, %v2140
    %v2152 = vsub.f32 %v2128, %v2142
    %v2153 = vsub.f32 %v2129, %v2144
    %v2154 = vsub.f32 %v2130, %v2146
    %v2155 = vmul.f32 %v2147, 1.442695
    %v2156 = vpow.pop %v2155
    %v2157 = vmul.f32 %v2148, 1.442695
    %v2158 = vpow.pop %v2157
    %v2159 = vmul.f32 %v2149, 1.442695
    %v2160 = vpow.pop %v2159
    %v2161 = vmul.f32 %v2150, 1.442695
    %v2162 = vpow.pop %v2161
    %v2163 = vmul.f32 %v2151, 1.442695
    %v2164 = vpow.pop %v2163
    %v2165 = vmul.f32 %v2152, 1.442695
    %v2166 = vpow.pop %v2165
    %v2167 = vmul.f32 %v2153, 1.442695
    %v2168 = vpow.pop %v2167
    %v2169 = vmul.f32 %v2154, 1.442695
    %v2170 = vpow.pop %v2169
    %2171 = vadd.xlane.f32.xlu0 %v2156
    %v2172 = vpop.xlane.xlu0 %2171
    %2173 = vadd.xlane.f32.xlu0 %v2158
    %v2174 = vpop.xlane.xlu0 %2173
    %2175 = vadd.xlane.f32.xlu0 %v2160
    %v2176 = vpop.xlane.xlu0 %2175
    %2177 = vadd.xlane.f32.xlu0 %v2162
    %v2178 = vpop.xlane.xlu0 %2177
    %2179 = vadd.xlane.f32.xlu0 %v2164
    %v2180 = vpop.xlane.xlu0 %2179
    %2181 = vadd.xlane.f32.xlu0 %v2166
    %v2182 = vpop.xlane.xlu0 %2181
    %2183 = vadd.xlane.f32.xlu0 %v2168
    %v2184 = vpop.xlane.xlu0 %2183
    %2185 = vadd.xlane.f32.xlu0 %v2170
    %v2186 = vpop.xlane.xlu0 %2185
    %v2187 = vlog2.pop %v2172
    %v2188 = vmul.f32 %v2187, 0.6931472
    %v2189 = vlog2.pop %v2174
    %v2190 = vmul.f32 %v2189, 0.6931472
    %v2191 = vlog2.pop %v2176
    %v2192 = vmul.f32 %v2191, 0.6931472
    %v2193 = vlog2.pop %v2178
    %v2194 = vmul.f32 %v2193, 0.6931472
    %v2195 = vlog2.pop %v2180
    %v2196 = vmul.f32 %v2195, 0.6931472
    %v2197 = vlog2.pop %v2182
    %v2198 = vmul.f32 %v2197, 0.6931472
    %v2199 = vlog2.pop %v2184
    %v2200 = vmul.f32 %v2199, 0.6931472
    %v2201 = vlog2.pop %v2186
    %v2202 = vmul.f32 %v2201, 0.6931472
    %v2203 = vsub.f32 %v2147, %v2188
    %v2204 = vsub.f32 %v2148, %v2190
    %v2205 = vsub.f32 %v2149, %v2192
    %v2206 = vsub.f32 %v2150, %v2194
    %v2207 = vsub.f32 %v2151, %v2196
    %v2208 = vsub.f32 %v2152, %v2198
    %v2209 = vsub.f32 %v2153, %v2200
    %v2210 = vsub.f32 %v2154, %v2202
    %2211 = vst [vmem:[#allocation10] sm:$0xff] %v2203
    %2212 = vst [vmem:[#allocation10 + $0x8] sm:$0xff] %v2204
    %2213 = vst [vmem:[#allocation10 + $0x10] sm:$0xff] %v2205
    %2214 = vst [vmem:[#allocation10 + $0x18] sm:$0xff] %v2206
    %2215 = vst [vmem:[#allocation10 + $0x20] sm:$0xff] %v2207
    %2216 = vst [vmem:[#allocation10 + $0x28] sm:$0xff] %v2208
    %2217 = vst [vmem:[#allocation10 + $0x30] sm:$0xff] %v2209
    %2218 = vst [vmem:[#allocation10 + $0x38] sm:$0xff] %v2210
    // Predicated region
    $region42: #{tpu_custom_call.1} parent=1 // pred_check
      _
    $region43: #{tpu_custom_call.1} parent=1 // pred_check_branch
      %2220 = sbr.rel (0) target = $region45
    $region44: #{tpu_custom_call.1} parent=1 // pred_region
      %s2222 = ssub.s32 1024, 1024
      %2223 = vsyncadd [#allocation4], %s2222
      %s2224 = sshll.u32 [#allocation10], 4
      %s2225 = int_to_ptr.vmem [resolvable:$true] %s2224
      %2230 = dma.vmem_to_hbm [thread:$0]  %s2225, 1024, %s6, [#allocation4], 128, 128, 8
    $region45: #{tpu_custom_call.1} parent=1 // pred_fallthru
      _
    // Predicated region
    $region46: #{tpu_custom_call.1} parent=1 // pred_check
      _
    $region47: #{tpu_custom_call.1} parent=1 // pred_check_branch
      %2232 = sbr.rel (0) target = $region49
    $region48: #{tpu_custom_call.1} parent=1 // pred_region
      %2233 = dma.done [#allocation4], 1024
    $region49: #{tpu_custom_call.1} parent=1 // pred_fallthru
      _
    %2234 = vsyncpa [#allocation3], 1
    %2235 = vsyncpa [#allocation6], 1
    %2236 = vsyncpa [#allocation9], 1
    %2237 = vsyncpa [#allocation4], 1

</llo_original>
